<compile_context>
chip_gen: v7x
topology: tpu7x:2x2x1
jax: 0.10.0
libtpu: 0.0.40
codegen_flags: <defaults>
</compile_context>

<pallas_src>
import jax
import jax.numpy as jnp
from jax.experimental import pallas as pl
from jax.experimental.pallas import tpu as pltpu


def _conv_stats_kernel(x_ref, w_ref, b_ref, y_ref, stats_ref):
    # x_ref:     (1, 1, TH+2, 2, W2, 3*Cin) bf16  halo'd, kw-folded input row tile
    # w_ref:     (3, 3*Cin, Cp)             bf16  weights, kh-major
    # b_ref:     (1, Cp)                    f32   conv bias
    # y_ref:     (1, TH, 2, W2, Cp)         f32   conv+bias output tile
    # stats_ref: (1, 1, 8, Cp)              f32   row0=sum, row1=sumsq, rest 0
    _, _, thp2, _, w2, k3 = x_ref.shape
    th = thp2 - 2
    cp = y_ref.shape[-1]
    m = th * 2 * w2

    x = x_ref[0, 0]                                     # (TH+2, 2, W2, 3Cin) bf16
    acc = jnp.dot(x[0:th].reshape(m, k3), w_ref[0],
                  preferred_element_type=jnp.float32)
    acc = acc + jnp.dot(x[1:th + 1].reshape(m, k3), w_ref[1],
                        preferred_element_type=jnp.float32)
    acc = acc + jnp.dot(x[2:th + 2].reshape(m, k3), w_ref[2],
                        preferred_element_type=jnp.float32)
    acc = acc + b_ref[...]                              # conv bias (1, Cp) broadcast

    y_ref[0] = acc.reshape(th, 2, w2, cp)

    # per-tile BatchNorm partial statistics (f32 accumulation)
    s = jnp.sum(acc, axis=0, keepdims=True)             # (1, Cp)
    ss = jnp.sum(acc * acc, axis=0, keepdims=True)      # (1, Cp)
    rows = jax.lax.broadcasted_iota(jnp.int32, (8, cp), 0)
    stats_ref[0, 0] = jnp.where(
        rows == 0, jnp.broadcast_to(s, (8, cp)),
        jnp.where(rows == 1, jnp.broadcast_to(ss, (8, cp)), 0.0))


def _bn_relu_pool_kernel(y_ref, scale_ref, shift_ref, out_ref):
    # y_ref:   (1, TH, 2, W2, Cp) f32 conv output tile (W-parity-major)
    # scale/shift: (1, Cp) f32 fused BN affine
    # out_ref: (1, TH/2, W2, Cp) f32 pooled output tile
    _, th, _, w2, cp = y_ref.shape
    y = y_ref[0]                                        # (TH, 2, W2, Cp)
    z = y * scale_ref[...] + shift_ref[...]             # BatchNorm (fused affine)
    z = jnp.where(z > 0, z, 0.01 * z)                   # LeakyReLU(0.01)
    zw = jnp.maximum(z[:, 0], z[:, 1])                  # (TH, W2, Cp) pool over W pairs
    t = zw.reshape(th // 2, 2, w2, cp)
    out_ref[0] = jnp.maximum(t[:, 0], t[:, 1])          # (TH/2, W2, Cp) pool over H pairs


def conv2d_encode_block(x, weight, bias, gamma, beta, *, row_tile=None, eps=1e-5):
    """x: (N, Cin, H, W) f32; weight: (Cout, Cin, 3, 3); returns (N, Cout, H/2, W/2)."""
    n, cin, h, w = x.shape
    cout = weight.shape[0]
    assert h % 2 == 0 and w % 2 == 0, "MaxPool2d(2) needs even spatial dims"
    h2, w2 = h // 2, w // 2
    cp = ((cout + 127) // 128) * 128                    # lane-dense channel padding
    k3 = 3 * cin

    if row_tile is None:
        row_tile = h
        for t in (128, 64, 32, 16, 8, 4, 2):
            if h % t == 0:
                row_tile = t
                break
    th = row_tile
    assert h % th == 0 and th % 2 == 0
    nt = h // th

    # ---- host-side layout prep (bf16, no 9x im2col blow-up) ----
    x_cl = jnp.transpose(x, (0, 2, 3, 1)).astype(jnp.bfloat16)          # NHWC
    xp = jnp.pad(x_cl, ((0, 0), (1, 1), (1, 1), (0, 0)))                # (N, H+2, W+2, Cin)
    # fold kw taps into the lane dim: x3[n,hp,w, kw*Cin+ci] = xp[n,hp,w+kw,ci]
    x3 = jnp.concatenate([xp[:, :, kw:kw + w, :] for kw in range(3)], axis=-1)
    # split W into (parity, W/2) so the pool's W-reduction is an outer-dim max in-kernel
    x3 = x3.reshape(n, h + 2, w2, 2, k3).transpose(0, 1, 3, 2, 4)       # (N, H+2, 2, W2, 3Cin)
    # halo'd row tiles: TH output rows need TH+2 padded input rows
    row_idx = jnp.arange(nt)[:, None] * th + jnp.arange(th + 2)[None, :]
    x_tiles = jnp.take(x3, row_idx, axis=1)                             # (N, nT, TH+2, 2, W2, 3Cin)

    # weight (Cout, Cin, 3, 3) -> (kh, kw*Cin+ci, co), lane-padded, bf16
    w_f = jnp.transpose(weight, (2, 3, 1, 0)).reshape(3, k3, cout)
    w_f = jnp.pad(w_f, ((0, 0), (0, 0), (0, cp - cout))).astype(jnp.bfloat16)
    b_p = jnp.pad(bias, (0, cp - cout)).reshape(1, cp).astype(jnp.float32)

    # ---- pass 1: conv + bias + per-tile BN partial sums ----
    conv_y, stats = pl.pallas_call(
        _conv_stats_kernel,
        grid=(n, nt),
        in_specs=[
            pl.BlockSpec((1, 1, th + 2, 2, w2, k3), lambda b, i: (b, i, 0, 0, 0, 0)),
            pl.BlockSpec((3, k3, cp), lambda b, i: (0, 0, 0)),
            pl.BlockSpec((1, cp), lambda b, i: (0, 0)),
        ],
        out_specs=[
            pl.BlockSpec((1, th, 2, w2, cp), lambda b, i: (b, i, 0, 0, 0)),
            pl.BlockSpec((1, 1, 8, cp), lambda b, i: (b, i, 0, 0)),
        ],
        out_shape=[
            jax.ShapeDtypeStruct((n, h, 2, w2, cp), jnp.float32),
            jax.ShapeDtypeStruct((n, nt, 8, cp), jnp.float32),
        ],
        compiler_params=pltpu.CompilerParams(
            dimension_semantics=("parallel", "parallel")),
    )(x_tiles, w_f, b_p)

    # ---- BatchNorm batch statistics -> fused scale/shift (O(C) work in plain JAX) ----
    # TODO(synk): running_mean/running_var buffer updates are a training side effect
    # that does not change the forward output; not reproduced here.
    cnt = jnp.float32(n * h * w)
    mean = jnp.sum(stats[:, :, 0, :], axis=(0, 1)) / cnt
    msq = jnp.sum(stats[:, :, 1, :], axis=(0, 1)) / cnt
    var = msq - mean * mean                                  # biased batch variance
    gamma_p = jnp.pad(gamma, (0, cp - cout)).astype(jnp.float32)
    beta_p = jnp.pad(beta, (0, cp - cout)).astype(jnp.float32)
    inv = gamma_p * jax.lax.rsqrt(var + eps)
    scale = inv.reshape(1, cp)
    shift = (beta_p - mean * inv).reshape(1, cp)

    # ---- pass 2: BN apply + LeakyReLU + MaxPool2d(2) ----
    out_p = pl.pallas_call(
        _bn_relu_pool_kernel,
        grid=(n, nt),
        in_specs=[
            pl.BlockSpec((1, th, 2, w2, cp), lambda b, i: (b, i, 0, 0, 0)),
            pl.BlockSpec((1, cp), lambda b, i: (0, 0)),
            pl.BlockSpec((1, cp), lambda b, i: (0, 0)),
        ],
        out_specs=pl.BlockSpec((1, th // 2, w2, cp), lambda b, i: (b, i, 0, 0)),
        out_shape=jax.ShapeDtypeStruct((n, h2, w2, cp), jnp.float32),
        compiler_params=pltpu.CompilerParams(
            dimension_semantics=("parallel", "parallel")),
    )(conv_y, scale, shift)

    out = out_p[..., :cout]                       # drop lane padding
    return jnp.transpose(out, (0, 3, 1, 2))       # NHWC -> NCHW


def _reference(x, weight, bias, gamma, beta, eps=1e-5):
    """Pure-JAX reference of the PyTorch forward (training-mode BatchNorm)."""
    y = jax.lax.conv_general_dilated(
        x, weight, window_strides=(1, 1), padding=((1, 1), (1, 1)),
        dimension_numbers=("NCHW", "OIHW", "NCHW"))
    y = y + bias.reshape(1, -1, 1, 1)
    mean = jnp.mean(y, axis=(0, 2, 3), keepdims=True)
    var = jnp.mean((y - mean) ** 2, axis=(0, 2, 3), keepdims=True)
    y = (y - mean) * jax.lax.rsqrt(var + eps)
    y = y * gamma.reshape(1, -1, 1, 1) + beta.reshape(1, -1, 1, 1)
    y = jnp.where(y > 0, y, 0.01 * y)
    nb, c, hh, ww = y.shape
    y = y.reshape(nb, c, hh // 2, 2, ww // 2, 2)
    return jnp.max(y, axis=(3, 5))


if __name__ == "__main__":
    key = jax.random.PRNGKey(0)
    kx, kw, kb, kg, kbe = jax.random.split(key, 5)

    N, Cin, H, W = 2, 4, 16, 16
    Cout = 8

    x = jax.random.normal(kx, (N, Cin, H, W), jnp.float32)
    weight = 0.1 * jax.random.normal(kw, (Cout, Cin, 3, 3), jnp.float32)
    bias = 0.1 * jax.random.normal(kb, (Cout,), jnp.float32)
    gamma = 1.0 + 0.1 * jax.random.normal(kg, (Cout,), jnp.float32)   # BN weight
    beta = 0.1 * jax.random.normal(kbe, (Cout,), jnp.float32)         # BN bias

    fwd = jax.jit(conv2d_encode_block, static_argnames=("row_tile",))
    out = fwd(x, weight, bias, gamma, beta, row_tile=8)   # row_tile=8 -> 2x2 grid
    out = jax.block_until_ready(out)

    ref = _reference(x, weight, bias, gamma, beta)
    assert out.shape == (N, Cout, H // 2, W // 2), out.shape
    max_err = float(jnp.max(jnp.abs(out - ref)))
    assert jnp.allclose(out, ref, atol=5e-2, rtol=5e-2), max_err

    print("KERNEL_OK")
</pallas_src>

<mosaic_0001>
module attributes {stable_mosaic.version = 11 : i64} {
  func.func @_conv_stats_kernel(%arg0: i32, %arg1: i32, %arg2: memref<1x1x10x2x8x12xbf16, #tpu.memory_space<vmem>>, %arg3: memref<3x12x128xbf16, #tpu.memory_space<vmem>>, %arg4: memref<1x128xf32, #tpu.memory_space<vmem>>, %arg5: memref<1x8x2x8x128xf32, #tpu.memory_space<vmem>>, %arg6: memref<1x1x8x128xf32, #tpu.memory_space<vmem>>) attributes {dimension_semantics = [#tpu.dimension_semantics<parallel>, #tpu.dimension_semantics<parallel>], iteration_bounds = array<i64: 2, 2>, scalar_prefetch = 0 : i64, scratch_operands = 0 : i64, tpu.core_type = #tpu.core_type<tc>, window_params = [{transform_indices = @transform_0, window_bounds = array<i64: 1, 1, 10, 2, 8, 12>}, {pipeline_mode = #tpu.pipeline_mode<synchronous>, transform_indices = @transform_1, window_bounds = array<i64: 3, 12, 128>}, {pipeline_mode = #tpu.pipeline_mode<synchronous>, transform_indices = @transform_2, window_bounds = array<i64: 1, 128>}, {transform_indices = @transform_3, window_bounds = array<i64: 1, 8, 2, 8, 128>}, {transform_indices = @transform_4, window_bounds = array<i64: 1, 1, 8, 128>}]} {
    %c0 = arith.constant 0 : index
    %c0_0 = arith.constant 0 : index
    %c0_1 = arith.constant 0 : index
    %c0_2 = arith.constant 0 : index
    %c0_3 = arith.constant 0 : index
    %c0_4 = arith.constant 0 : index
    %0 = vector.load %arg2[%c0, %c0_0, %c0_1, %c0_2, %c0_3, %c0_4] : memref<1x1x10x2x8x12xbf16, #tpu.memory_space<vmem>>, vector<1x1x10x2x8x12xbf16>
    %1 = vector.shape_cast %0 : vector<1x1x10x2x8x12xbf16> to vector<10x2x8x12xbf16>
    %2 = vector.extract_strided_slice %1 {offsets = [0, 0, 0, 0], sizes = [8, 2, 8, 12], strides = [1, 1, 1, 1]} : vector<10x2x8x12xbf16> to vector<8x2x8x12xbf16>
    %3 = vector.shape_cast %2 : vector<8x2x8x12xbf16> to vector<128x12xbf16>
    %c0_5 = arith.constant 0 : index
    %c0_6 = arith.constant 0 : index
    %c0_7 = arith.constant 0 : index
    %4 = vector.load %arg3[%c0_5, %c0_6, %c0_7] : memref<3x12x128xbf16, #tpu.memory_space<vmem>>, vector<1x12x128xbf16>
    %5 = vector.shape_cast %4 : vector<1x12x128xbf16> to vector<12x128xbf16>
    %cst = arith.constant dense<0.000000e+00> : vector<128x128xf32>
    %6 = tpu.matmul %3, %5, %cst {dimension_numbers = #tpu.dot_dimension_numbers<[1], [0], [0], [1], [0, 0, 1, 1], [], []>} : vector<128x12xbf16>, vector<12x128xbf16>, vector<128x128xf32> -> vector<128x128xf32>
    %7 = vector.extract_strided_slice %1 {offsets = [1, 0, 0, 0], sizes = [8, 2, 8, 12], strides = [1, 1, 1, 1]} : vector<10x2x8x12xbf16> to vector<8x2x8x12xbf16>
    %8 = vector.shape_cast %7 : vector<8x2x8x12xbf16> to vector<128x12xbf16>
    %c1 = arith.constant 1 : index
    %c0_8 = arith.constant 0 : index
    %c0_9 = arith.constant 0 : index
    %9 = vector.load %arg3[%c1, %c0_8, %c0_9] : memref<3x12x128xbf16, #tpu.memory_space<vmem>>, vector<1x12x128xbf16>
    %10 = vector.shape_cast %9 : vector<1x12x128xbf16> to vector<12x128xbf16>
    %cst_10 = arith.constant dense<0.000000e+00> : vector<128x128xf32>
    %11 = tpu.matmul %8, %10, %cst_10 {dimension_numbers = #tpu.dot_dimension_numbers<[1], [0], [0], [1], [0, 0, 1, 1], [], []>} : vector<128x12xbf16>, vector<12x128xbf16>, vector<128x128xf32> -> vector<128x128xf32>
    %12 = arith.addf %6, %11 : vector<128x128xf32>
    %13 = vector.extract_strided_slice %1 {offsets = [2, 0, 0, 0], sizes = [8, 2, 8, 12], strides = [1, 1, 1, 1]} : vector<10x2x8x12xbf16> to vector<8x2x8x12xbf16>
    %14 = vector.shape_cast %13 : vector<8x2x8x12xbf16> to vector<128x12xbf16>
    %c2 = arith.constant 2 : index
    %c0_11 = arith.constant 0 : index
    %c0_12 = arith.constant 0 : index
    %15 = vector.load %arg3[%c2, %c0_11, %c0_12] : memref<3x12x128xbf16, #tpu.memory_space<vmem>>, vector<1x12x128xbf16>
    %16 = vector.shape_cast %15 : vector<1x12x128xbf16> to vector<12x128xbf16>
    %cst_13 = arith.constant dense<0.000000e+00> : vector<128x128xf32>
    %17 = tpu.matmul %14, %16, %cst_13 {dimension_numbers = #tpu.dot_dimension_numbers<[1], [0], [0], [1], [0, 0, 1, 1], [], []>} : vector<128x12xbf16>, vector<12x128xbf16>, vector<128x128xf32> -> vector<128x128xf32>
    %18 = arith.addf %12, %17 : vector<128x128xf32>
    %c0_14 = arith.constant 0 : index
    %c0_15 = arith.constant 0 : index
    %19 = vector.load %arg4[%c0_14, %c0_15] : memref<1x128xf32, #tpu.memory_space<vmem>>, vector<1x128xf32>
    %20 = vector.broadcast %19 : vector<1x128xf32> to vector<128x128xf32>
    %21 = arith.addf %18, %20 : vector<128x128xf32>
    %22 = vector.shape_cast %21 : vector<128x128xf32> to vector<8x2x8x128xf32>
    %c0_16 = arith.constant 0 : index
    %c0_17 = arith.constant 0 : index
    %c0_18 = arith.constant 0 : index
    %c0_19 = arith.constant 0 : index
    %c0_20 = arith.constant 0 : index
    %23 = vector.load %arg5[%c0_16, %c0_17, %c0_18, %c0_19, %c0_20] : memref<1x8x2x8x128xf32, #tpu.memory_space<vmem>>, vector<1x8x2x8x128xf32>
    %24 = vector.shape_cast %23 : vector<1x8x2x8x128xf32> to vector<8x2x8x128xf32>
    %25 = vector.shape_cast %22 : vector<8x2x8x128xf32> to vector<1x8x2x8x128xf32>
    tpu.vector_store %arg5[%c0_16, %c0_17, %c0_18, %c0_19, %c0_20], %25 {strides = array<i32>} : memref<1x8x2x8x128xf32, #tpu.memory_space<vmem>>, vector<1x8x2x8x128xf32>,
    %cst_21 = arith.constant dense<0.000000e+00> : vector<128xf32>
    %26 = vector.multi_reduction <add>, %21, %cst_21 [0] : vector<128x128xf32> to vector<128xf32>
    %27 = vector.shape_cast %26 : vector<128xf32> to vector<1x128xf32>
    %28 = arith.mulf %21, %21 : vector<128x128xf32>
    %cst_22 = arith.constant dense<0.000000e+00> : vector<128xf32>
    %29 = vector.multi_reduction <add>, %28, %cst_22 [0] : vector<128x128xf32> to vector<128xf32>
    %30 = vector.shape_cast %29 : vector<128xf32> to vector<1x128xf32>
    %31 = tpu.iota {dimensions = array<i32: 0>} : vector<8x128xi32>
    %c0_i32 = arith.constant 0 : i32
    %32 = vector.broadcast %c0_i32 : i32 to vector<8x128xi32>
    %33 = arith.cmpi eq, %31, %32 : vector<8x128xi32>
    %34 = vector.shape_cast %27 : vector<1x128xf32> to vector<1x128xf32>
    %35 = vector.broadcast %34 : vector<1x128xf32> to vector<8x128xf32>
    %c1_i32 = arith.constant 1 : i32
    %36 = vector.broadcast %c1_i32 : i32 to vector<8x128xi32>
    %37 = arith.cmpi eq, %31, %36 : vector<8x128xi32>
    %38 = vector.shape_cast %30 : vector<1x128xf32> to vector<1x128xf32>
    %39 = vector.broadcast %38 : vector<1x128xf32> to vector<8x128xf32>
    %cst_23 = arith.constant 0.000000e+00 : f32
    %40 = vector.broadcast %cst_23 : f32 to vector<8x128xf32>
    %41 = arith.select %37, %39, %40 : vector<8x128xi1>, vector<8x128xf32>
    %42 = arith.select %33, %35, %41 : vector<8x128xi1>, vector<8x128xf32>
    %c0_24 = arith.constant 0 : index
    %c0_25 = arith.constant 0 : index
    %c0_26 = arith.constant 0 : index
    %c0_27 = arith.constant 0 : index
    %43 = vector.load %arg6[%c0_24, %c0_25, %c0_26, %c0_27] : memref<1x1x8x128xf32, #tpu.memory_space<vmem>>, vector<1x1x8x128xf32>
    %44 = vector.shape_cast %43 : vector<1x1x8x128xf32> to vector<8x128xf32>
    %45 = vector.shape_cast %42 : vector<8x128xf32> to vector<1x1x8x128xf32>
    tpu.vector_store %arg6[%c0_24, %c0_25, %c0_26, %c0_27], %45 {strides = array<i32>} : memref<1x1x8x128xf32, #tpu.memory_space<vmem>>, vector<1x1x8x128xf32>,
    return
  }
  func.func @transform_0(%arg0: i32, %arg1: i32) -> (i32, i32, i32, i32, i32, i32) {
    %c0_i32 = arith.constant 0 : i32
    %c0_i32_0 = arith.constant 0 : i32
    %c0_i32_1 = arith.constant 0 : i32
    %c0_i32_2 = arith.constant 0 : i32
    %c0_i32_3 = arith.constant 0 : i32
    return %arg0, %arg1, %c0_i32, %c0_i32_0, %c0_i32_1, %c0_i32_2 : i32, i32, i32, i32, i32, i32
  }
  func.func @transform_1(%arg0: i32, %arg1: i32) -> (i32, i32, i32) {
    %c0_i32 = arith.constant 0 : i32
    %c0_i32_0 = arith.constant 0 : i32
    %c0_i32_1 = arith.constant 0 : i32
    %c0_i32_2 = arith.constant 0 : i32
    return %c0_i32, %c0_i32_0, %c0_i32_1 : i32, i32, i32
  }
  func.func @transform_2(%arg0: i32, %arg1: i32) -> (i32, i32) {
    %c0_i32 = arith.constant 0 : i32
    %c0_i32_0 = arith.constant 0 : i32
    %c0_i32_1 = arith.constant 0 : i32
    return %c0_i32, %c0_i32_0 : i32, i32
  }
  func.func @transform_3(%arg0: i32, %arg1: i32) -> (i32, i32, i32, i32, i32) {
    %c0_i32 = arith.constant 0 : i32
    %c0_i32_0 = arith.constant 0 : i32
    %c0_i32_1 = arith.constant 0 : i32
    %c0_i32_2 = arith.constant 0 : i32
    return %arg0, %arg1, %c0_i32, %c0_i32_0, %c0_i32_1 : i32, i32, i32, i32, i32
  }
  func.func @transform_4(%arg0: i32, %arg1: i32) -> (i32, i32, i32, i32) {
    %c0_i32 = arith.constant 0 : i32
    %c0_i32_0 = arith.constant 0 : i32
    %c0_i32_1 = arith.constant 0 : i32
    return %arg0, %arg1, %c0_i32, %c0_i32_0 : i32, i32, i32, i32
  }
}

module attributes {stable_mosaic.version = 11 : i64} {
  func.func @_bn_relu_pool_kernel(%arg0: i32, %arg1: i32, %arg2: memref<1x8x2x8x128xf32, #tpu.memory_space<vmem>>, %arg3: memref<1x128xf32, #tpu.memory_space<vmem>>, %arg4: memref<1x128xf32, #tpu.memory_space<vmem>>, %arg5: memref<1x4x8x128xf32, #tpu.memory_space<vmem>>) attributes {dimension_semantics = [#tpu.dimension_semantics<parallel>, #tpu.dimension_semantics<parallel>], iteration_bounds = array<i64: 2, 2>, scalar_prefetch = 0 : i64, scratch_operands = 0 : i64, tpu.core_type = #tpu.core_type<tc>, window_params = [{transform_indices = @transform_0, window_bounds = array<i64: 1, 8, 2, 8, 128>}, {pipeline_mode = #tpu.pipeline_mode<synchronous>, transform_indices = @transform_1, window_bounds = array<i64: 1, 128>}, {pipeline_mode = #tpu.pipeline_mode<synchronous>, transform_indices = @transform_2, window_bounds = array<i64: 1, 128>}, {transform_indices = @transform_3, window_bounds = array<i64: 1, 4, 8, 128>}]} {
    %c0 = arith.constant 0 : index
    %c0_0 = arith.constant 0 : index
    %c0_1 = arith.constant 0 : index
    %c0_2 = arith.constant 0 : index
    %c0_3 = arith.constant 0 : index
    %0 = vector.load %arg2[%c0, %c0_0, %c0_1, %c0_2, %c0_3] : memref<1x8x2x8x128xf32, #tpu.memory_space<vmem>>, vector<1x8x2x8x128xf32>
    %1 = vector.shape_cast %0 : vector<1x8x2x8x128xf32> to vector<8x2x8x128xf32>
    %c0_4 = arith.constant 0 : index
    %c0_5 = arith.constant 0 : index
    %2 = vector.load %arg3[%c0_4, %c0_5] : memref<1x128xf32, #tpu.memory_space<vmem>>, vector<1x128xf32>
    %3 = vector.shape_cast %2 : vector<1x128xf32> to vector<1x1x1x128xf32>
    %4 = vector.broadcast %3 : vector<1x1x1x128xf32> to vector<8x2x8x128xf32>
    %5 = arith.mulf %1, %4 : vector<8x2x8x128xf32>
    %c0_6 = arith.constant 0 : index
    %c0_7 = arith.constant 0 : index
    %6 = vector.load %arg4[%c0_6, %c0_7] : memref<1x128xf32, #tpu.memory_space<vmem>>, vector<1x128xf32>
    %7 = vector.shape_cast %6 : vector<1x128xf32> to vector<1x1x1x128xf32>
    %8 = vector.broadcast %7 : vector<1x1x1x128xf32> to vector<8x2x8x128xf32>
    %9 = arith.addf %5, %8 : vector<8x2x8x128xf32>
    %cst = arith.constant 0.000000e+00 : f32
    %10 = vector.broadcast %cst : f32 to vector<8x2x8x128xf32>
    %11 = arith.cmpf ogt, %9, %10 : vector<8x2x8x128xf32>
    %cst_8 = arith.constant 0.00999999977 : f32
    %12 = vector.broadcast %cst_8 : f32 to vector<8x2x8x128xf32>
    %13 = arith.mulf %12, %9 : vector<8x2x8x128xf32>
    %14 = arith.select %11, %9, %13 : vector<8x2x8x128xi1>, vector<8x2x8x128xf32>
    %15 = vector.extract_strided_slice %14 {offsets = [0, 0, 0, 0], sizes = [8, 1, 8, 128], strides = [1, 1, 1, 1]} : vector<8x2x8x128xf32> to vector<8x1x8x128xf32>
    %16 = vector.shape_cast %15 : vector<8x1x8x128xf32> to vector<8x8x128xf32>
    %17 = vector.extract_strided_slice %14 {offsets = [0, 1, 0, 0], sizes = [8, 1, 8, 128], strides = [1, 1, 1, 1]} : vector<8x2x8x128xf32> to vector<8x1x8x128xf32>
    %18 = vector.shape_cast %17 : vector<8x1x8x128xf32> to vector<8x8x128xf32>
    %19 = arith.maximumf %16, %18 : vector<8x8x128xf32>
    %20 = vector.shape_cast %19 : vector<8x8x128xf32> to vector<4x2x8x128xf32>
    %21 = vector.extract_strided_slice %20 {offsets = [0, 0, 0, 0], sizes = [4, 1, 8, 128], strides = [1, 1, 1, 1]} : vector<4x2x8x128xf32> to vector<4x1x8x128xf32>
    %22 = vector.shape_cast %21 : vector<4x1x8x128xf32> to vector<4x8x128xf32>
    %23 = vector.extract_strided_slice %20 {offsets = [0, 1, 0, 0], sizes = [4, 1, 8, 128], strides = [1, 1, 1, 1]} : vector<4x2x8x128xf32> to vector<4x1x8x128xf32>
    %24 = vector.shape_cast %23 : vector<4x1x8x128xf32> to vector<4x8x128xf32>
    %25 = arith.maximumf %22, %24 : vector<4x8x128xf32>
    %c0_9 = arith.constant 0 : index
    %c0_10 = arith.constant 0 : index
    %c0_11 = arith.constant 0 : index
    %c0_12 = arith.constant 0 : index
    %26 = vector.load %arg5[%c0_9, %c0_10, %c0_11, %c0_12] : memref<1x4x8x128xf32, #tpu.memory_space<vmem>>, vector<1x4x8x128xf32>
    %27 = vector.shape_cast %26 : vector<1x4x8x128xf32> to vector<4x8x128xf32>
    %28 = vector.shape_cast %25 : vector<4x8x128xf32> to vector<1x4x8x128xf32>
    tpu.vector_store %arg5[%c0_9, %c0_10, %c0_11, %c0_12], %28 {strides = array<i32>} : memref<1x4x8x128xf32, #tpu.memory_space<vmem>>, vector<1x4x8x128xf32>,
    return
  }
  func.func @transform_0(%arg0: i32, %arg1: i32) -> (i32, i32, i32, i32, i32) {
    %c0_i32 = arith.constant 0 : i32
    %c0_i32_0 = arith.constant 0 : i32
    %c0_i32_1 = arith.constant 0 : i32
    %c0_i32_2 = arith.constant 0 : i32
    return %arg0, %arg1, %c0_i32, %c0_i32_0, %c0_i32_1 : i32, i32, i32, i32, i32
  }
  func.func @transform_1(%arg0: i32, %arg1: i32) -> (i32, i32) {
    %c0_i32 = arith.constant 0 : i32
    %c0_i32_0 = arith.constant 0 : i32
    %c0_i32_1 = arith.constant 0 : i32
    return %c0_i32, %c0_i32_0 : i32, i32
  }
  func.func @transform_2(%arg0: i32, %arg1: i32) -> (i32, i32) {
    %c0_i32 = arith.constant 0 : i32
    %c0_i32_0 = arith.constant 0 : i32
    %c0_i32_1 = arith.constant 0 : i32
    return %c0_i32, %c0_i32_0 : i32, i32
  }
  func.func @transform_3(%arg0: i32, %arg1: i32) -> (i32, i32, i32, i32) {
    %c0_i32 = arith.constant 0 : i32
    %c0_i32_0 = arith.constant 0 : i32
    %c0_i32_1 = arith.constant 0 : i32
    return %arg0, %arg1, %c0_i32, %c0_i32_0 : i32, i32, i32, i32
  }
}

</mosaic_0001>

<llo_original>
// kernel: conv2d_encode_block.3
$region0: #{conv2d_encode_block.3}
  #allocation0 [shape = 'u32[]', space=smem, size = 0x4, offset = 0x4, fixed_abs, tag = 'smem constant byte address 0x4 - core index']
  #allocation1 [shape = 'u32[144,128]{1,0:T(1,128)}', space=vmem, size = 0x12000, scoped, tag = 'internal scratch']
  %s0 = inlined_call_operand.vmem [shape: f32[2,16,2,8,128], index: 0, kind: input, shape index: {}]
  %s1 = inlined_call_operand.vmem [shape: f32[1,128], index: 1, kind: input, shape index: {}]
  %s2 = inlined_call_operand.vmem [shape: f32[1,128], index: 2, kind: input, shape index: {}]
  %s3 = inlined_call_operand.vmem [shape: f32[2,8,8,128], index: 3, kind: output, shape index: {}]
  %s4 = sld [smem:[#allocation0]]
  $region45: #{conv2d_encode_block.3} parent=0
    _
  %s6 = ssub.s32 1, %s4
  %s7 = scalar_select 0, %s6, %s4
  loop: start=0, step=1, limit=6
  $region2: #{conv2d_encode_block.3} parent=0 // loop_pre_header
    _
  $region3: #{conv2d_encode_block.3} parent=0 // loop_header
    %s9 = sphi 0, %s13
    %p10 = scmp.ge.s32.totalorder %s9, 6
    %s16 = sphi 0, %s28
    %s17 = sphi 0, %s24
    %s18 = sphi 0, %s16
    %s19 = sphi 0, %s17
    %s20 = sphi 0, %s18
    %s21 = sphi 0, %s19
    %s33 = sphi 0, %s35
    %s36 = sphi 0, %s33
    %s37 = sphi 0, %s36
    %s53 = sphi 0, %s37
    %s57 = sphi 0, %s57
    %s59 = sphi 0, %s57
    %s60 = sphi 0, %s59
    %s74 = sphi 0, %s60
    %s78 = sphi 0, %s78
    %s80 = sphi 0, %s78
    %s81 = sphi 0, %s80
    %s95 = sphi 0, %s81
    %s103 = sphi 0, %s105
    %s106 = sphi 0, %s103
    %s107 = sphi 0, %s106
    %s123 = sphi 0, %s107
  $region4: #{conv2d_encode_block.3} parent=0 // loop_header_branch
    %12 = sbr.rel (%p10) target = $region8
  $region5: #{conv2d_encode_block.3} parent=0 // loop_body
    %s14 = ssub.s32 %s9, 1
    %s15 = ssub.s32 %s9, 2
    %s22 = sadd.s32 1, %s17
    %p23 = scmp.ge.s32.totalorder %s22, 2
    %s24 = scalar_select %p23, 0, %s22
    %s25 = sadd.s32 1, %s16
    %s26 = scalar_select %p23, %s25, %s16
    %p27 = scmp.ge.s32.totalorder %s26, 2
    %s28 = scalar_select %p27, 0, %s26
    %s29 = ssub.s32 %s16, %s28
    %s30 = ssub.s32 %s17, %s24
    %s31 = sor.u32 %s29, %s30
    %p32 = scmp.eq.s32.totalorder %s31, 0
    %s34 = sadd.s32 %s33, 1
    %s35 = scalar_select %p32, %s33, %s34
    %p38 = pneg %p32
    %p39 = scmp.eq.s32.totalorder %s9, 3
    %p40 = por %p38, %p39
    %p41 = scmp.ne.s32.totalorder %s33, %s36
    %p42 = scmp.eq.s32.totalorder %s9, 0
    %p43 = por %p41, %p42
    %p44 = scmp.ne.s32.totalorder %s33, %s36
    %p45 = scmp.eq.s32.totalorder %s14, 3
    %p46 = por %p44, %p45
    %p47 = scmp.ne.s32.totalorder %s36, %s37
    %p48 = scmp.eq.s32.totalorder %s14, 0
    %p49 = por %p47, %p48
    %p50 = scmp.ne.s32.totalorder %s36, %s37
    %p51 = scmp.eq.s32.totalorder %s15, 3
    %p52 = por %p50, %p51
    %p54 = scmp.ne.s32.totalorder %s37, %s53
    %p55 = scmp.eq.s32.totalorder %s15, 0
    %p56 = por %p54, %p55
    %s58 = sadd.s32 %s57, 1
    %p61 = scmp.eq.s32.totalorder %s9, 3
    %p62 = scmp.ne.s32.totalorder %s57, %s59
    %p63 = scmp.eq.s32.totalorder %s9, 0
    %p64 = por %p62, %p63
    %p65 = scmp.ne.s32.totalorder %s57, %s59
    %p66 = scmp.eq.s32.totalorder %s14, 3
    %p67 = por %p65, %p66
    %p68 = scmp.ne.s32.totalorder %s59, %s60
    %p69 = scmp.eq.s32.totalorder %s14, 0
    %p70 = por %p68, %p69
    %p71 = scmp.ne.s32.totalorder %s59, %s60
    %p72 = scmp.eq.s32.totalorder %s15, 3
    %p73 = por %p71, %p72
    %p75 = scmp.ne.s32.totalorder %s60, %s74
    %p76 = scmp.eq.s32.totalorder %s15, 0
    %p77 = por %p75, %p76
    %s79 = sadd.s32 %s78, 1
    %p82 = scmp.eq.s32.totalorder %s9, 3
    %p83 = scmp.ne.s32.totalorder %s78, %s80
    %p84 = scmp.eq.s32.totalorder %s9, 0
    %p85 = por %p83, %p84
    %p86 = scmp.ne.s32.totalorder %s78, %s80
    %p87 = scmp.eq.s32.totalorder %s14, 3
    %p88 = por %p86, %p87
    %p89 = scmp.ne.s32.totalorder %s80, %s81
    %p90 = scmp.eq.s32.totalorder %s14, 0
    %p91 = por %p89, %p90
    %p92 = scmp.ne.s32.totalorder %s80, %s81
    %p93 = scmp.eq.s32.totalorder %s15, 3
    %p94 = por %p92, %p93
    %p96 = scmp.ne.s32.totalorder %s81, %s95
    %p97 = scmp.eq.s32.totalorder %s15, 0
    %p98 = por %p96, %p97
    %s99 = ssub.s32 %s16, %s28
    %s100 = ssub.s32 %s17, %s24
    %s101 = sor.u32 %s99, %s100
    %p102 = scmp.eq.s32.totalorder %s101, 0
    %s104 = sadd.s32 %s103, 1
    %s105 = scalar_select %p102, %s103, %s104
    %p108 = pneg %p102
    %p109 = scmp.eq.s32.totalorder %s9, 3
    %p110 = por %p108, %p109
    %p111 = scmp.ne.s32.totalorder %s103, %s106
    %p112 = scmp.eq.s32.totalorder %s9, 0
    %p113 = por %p111, %p112
    %p114 = scmp.ne.s32.totalorder %s103, %s106
    %p115 = scmp.eq.s32.totalorder %s14, 3
    %p116 = por %p114, %p115
    %p117 = scmp.ne.s32.totalorder %s106, %s107
    %p118 = scmp.eq.s32.totalorder %s14, 0
    %p119 = por %p117, %p118
    %p120 = scmp.ne.s32.totalorder %s106, %s107
    %p121 = scmp.eq.s32.totalorder %s15, 3
    %p122 = por %p120, %p121
    %p124 = scmp.ne.s32.totalorder %s107, %s123
    %p125 = scmp.eq.s32.totalorder %s15, 0
    %p126 = por %p124, %p125
    %p127 = scmp.le.s32.totalorder 1, %s9
    %p128 = scmp.lt.s32.totalorder %s9, 5
    %p129 = pnand %p127, %p128
    %p130 = pneg %p129
    // Predicated region
    $region9: #{conv2d_encode_block.3} parent=5 // pred_check
      _
    $region10: #{conv2d_encode_block.3} parent=5 // pred_check_branch
      %132 = sbr.rel (%p129) target = $region12
    $region11: #{conv2d_encode_block.3} parent=5 // pred_region
      %s133 = ssub.s32 %s9, 1
      // Predicated region
      $region13: #{conv2d_encode_block.3} parent=11 // pred_check
        %p134 = pneg %p70
      $region14: #{conv2d_encode_block.3} parent=11 // pred_check_branch
        %136 = sbr.rel (%p134) target = $region16
      $region15: #{conv2d_encode_block.3} parent=11 // pred_region
        _
      $region16: #{conv2d_encode_block.3} parent=11 // pred_fallthru
        _
      // Predicated region
      $region17: #{conv2d_encode_block.3} parent=11 // pred_check
        %p137 = pneg %p91
      $region18: #{conv2d_encode_block.3} parent=11 // pred_check_branch
        %139 = sbr.rel (%p137) target = $region20
      $region19: #{conv2d_encode_block.3} parent=11 // pred_region
        _
      $region20: #{conv2d_encode_block.3} parent=11 // pred_fallthru
        _
    $region12: #{conv2d_encode_block.3} parent=5 // pred_fallthru
      _
    %p140 = scmp.lt.s32.totalorder %s9, 4
    // Predicated region
    $region21: #{conv2d_encode_block.3} parent=5 // pred_check
      %p141 = pneg %p140
    $region22: #{conv2d_encode_block.3} parent=5 // pred_check_branch
      %143 = sbr.rel (%p141) target = $region24
    $region23: #{conv2d_encode_block.3} parent=5 // pred_region
      // Predicated region
      $region25: #{conv2d_encode_block.3} parent=23 // pred_check
        %p144 = pneg %p43
      $region26: #{conv2d_encode_block.3} parent=23 // pred_check_branch
        %146 = sbr.rel (%p144) target = $region28
      $region27: #{conv2d_encode_block.3} parent=23 // pred_region
        %s147 = smul.u32 8, %s17
        %p148 = scmp.lt.s32.totalorder %s16, 1
        %s149 = scalar_select %p148, %s16, 1
        %p150 = scmp.lt.s32.totalorder %s147, 15
        %s151 = scalar_select %p150, %s147, 15
        %s152 = smul.addr %s151, 2
        %s153 = smul.addr %s149, 32
        %s154 = sadd.s32 %s152, %s153
        %s155 = smul.addr %s154, 8
        %s156 = scalar_lea.vmem %s0, %s155
        %s157 = smul.u32 8, %s17
      $region28: #{conv2d_encode_block.3} parent=23 // pred_fallthru
        _
    $region24: #{conv2d_encode_block.3} parent=5 // pred_fallthru
      _
    %p158 = scmp.le.s32.totalorder 1, %s9
    %p159 = scmp.lt.s32.totalorder %s9, 5
    %p160 = pnand %p158, %p159
    %p161 = pneg %p160
    // Predicated region
    $region29: #{conv2d_encode_block.3} parent=5 // pred_check
      _
    $region30: #{conv2d_encode_block.3} parent=5 // pred_check_branch
      %163 = sbr.rel (%p160) target = $region32
    $region31: #{conv2d_encode_block.3} parent=5 // pred_region
      %s164 = ssub.s32 %s9, 1
      %s165 = smul.u32 8, %s19
      %p166 = scmp.lt.s32.totalorder %s18, 1
      %s167 = scalar_select %p166, %s18, 1
      %p168 = scmp.lt.s32.totalorder %s165, 15
      %s169 = scalar_select %p168, %s165, 15
      %s170 = smul.addr %s169, 2
      %s171 = smul.addr %s167, 32
      %s172 = sadd.s32 %s170, %s171
      %s173 = smul.addr %s172, 8
      %s174 = scalar_lea.vmem %s0, %s173
      %p175 = pneg %p49
      %p176 = pneg %p46
      %p177 = pneg %p70
      %p178 = pneg %p67
      %p179 = pneg %p91
      %p180 = pneg %p88
      %p181 = pneg %p119
      %p182 = pneg %p116
      %s183 = smul.u32 4, %s19
      %p184 = scmp.lt.s32.totalorder %s18, 1
      %s185 = scalar_select %p184, %s18, 1
      %p186 = scmp.lt.s32.totalorder %s183, 7
      %s187 = scalar_select %p186, %s183, 7
      %s188 = smul.addr %s185, 8
      %s189 = sadd.s32 %s187, %s188
      %s190 = smul.addr %s189, 8
      %s191 = scalar_lea.vmem %s3, %s190
      %s192 = smul.u32 8, %s19
      %p193 = scmp.lt.s32.totalorder %s18, 1
      %s194 = scalar_select %p193, %s18, 1
      %p195 = scmp.lt.s32.totalorder %s192, 15
      %s196 = scalar_select %p195, %s192, 15
      %s197 = smul.addr %s196, 2
      %s198 = smul.addr %s194, 32
      %s199 = sadd.s32 %s197, %s198
      %s200 = smul.addr %s199, 8
      %s201 = scalar_lea.vmem %s0, %s200
      %s202 = smul.u32 8, %s19
      %s203 = smul.u32 4, %s19
      %p204 = scmp.lt.s32.totalorder %s18, 1
      %s205 = scalar_select %p204, %s18, 1
      %p206 = scmp.lt.s32.totalorder %s203, 7
      %s207 = scalar_select %p206, %s203, 7
      %s208 = smul.addr %s205, 8
      %s209 = sadd.s32 %s207, %s208
      %s210 = smul.addr %s209, 8
      %s211 = scalar_lea.vmem %s3, %s210
      %s212 = smul.u32 4, %s19
      %v213 = vld [vmem:[%s201] sm:$0xff]
      %v214 = vld [vmem:[%s201 + $0x8] sm:$0xff]
      %v215 = vld [vmem:[%s201 + $0x10] sm:$0xff]
      %v216 = vld [vmem:[%s201 + $0x18] sm:$0xff]
      %v217 = vld [vmem:[%s201 + $0x20] sm:$0xff]
      %v218 = vld [vmem:[%s201 + $0x28] sm:$0xff]
      %v219 = vld [vmem:[%s201 + $0x30] sm:$0xff]
      %v220 = vld [vmem:[%s201 + $0x38] sm:$0xff]
      %v221 = vld [vmem:[%s201 + $0x40] sm:$0xff]
      %v222 = vld [vmem:[%s201 + $0x48] sm:$0xff]
      %v223 = vld [vmem:[%s201 + $0x50] sm:$0xff]
      %v224 = vld [vmem:[%s201 + $0x58] sm:$0xff]
      %v225 = vld [vmem:[%s201 + $0x60] sm:$0xff]
      %v226 = vld [vmem:[%s201 + $0x68] sm:$0xff]
      %v227 = vld [vmem:[%s201 + $0x70] sm:$0xff]
      %v228 = vld [vmem:[%s201 + $0x78] sm:$0xff]
      %v229 = vld [vmem:[%s1] sm:$0x1]
      %v231 = vlaneseq
      %v232 = vshrl.u32 %v231, 7
      %v233 = vsub.s32 0, %v232
      %v234 = vrot.slane %v229, %v233
      %v236 = vmul.f32 %v213, %v234
      %v237 = vmul.f32 %v214, %v234
      %v238 = vmul.f32 %v215, %v234
      %v239 = vmul.f32 %v216, %v234
      %v240 = vmul.f32 %v217, %v234
      %v241 = vmul.f32 %v218, %v234
      %v242 = vmul.f32 %v219, %v234
      %v243 = vmul.f32 %v220, %v234
      %v244 = vmul.f32 %v221, %v234
      %v245 = vmul.f32 %v222, %v234
      %v246 = vmul.f32 %v223, %v234
      %v247 = vmul.f32 %v224, %v234
      %v248 = vmul.f32 %v225, %v234
      %v249 = vmul.f32 %v226, %v234
      %v250 = vmul.f32 %v227, %v234
      %v251 = vmul.f32 %v228, %v234
      %v252 = vld [vmem:[%s2] sm:$0x1]
      %v254 = vlaneseq
      %v255 = vshrl.u32 %v254, 7
      %v256 = vsub.s32 0, %v255
      %v257 = vrot.slane %v252, %v256
      %v259 = vadd.f32 %v236, %v257
      %v260 = vadd.f32 %v237, %v257
      %v261 = vadd.f32 %v238, %v257
      %v262 = vadd.f32 %v239, %v257
      %v263 = vadd.f32 %v240, %v257
      %v264 = vadd.f32 %v241, %v257
      %v265 = vadd.f32 %v242, %v257
      %v266 = vadd.f32 %v243, %v257
      %v267 = vadd.f32 %v244, %v257
      %v268 = vadd.f32 %v245, %v257
      %v269 = vadd.f32 %v246, %v257
      %v270 = vadd.f32 %v247, %v257
      %v271 = vadd.f32 %v248, %v257
      %v272 = vadd.f32 %v249, %v257
      %v273 = vadd.f32 %v250, %v257
      %v274 = vadd.f32 %v251, %v257
      %vm275 = vcmp.gt.f32.partialorder %v259, 0.0
      %vm276 = vcmp.gt.f32.partialorder %v260, 0.0
      %vm277 = vcmp.gt.f32.partialorder %v261, 0.0
      %vm278 = vcmp.gt.f32.partialorder %v262, 0.0
      %vm279 = vcmp.gt.f32.partialorder %v263, 0.0
      %vm280 = vcmp.gt.f32.partialorder %v264, 0.0
      %vm281 = vcmp.gt.f32.partialorder %v265, 0.0
      %vm282 = vcmp.gt.f32.partialorder %v266, 0.0
      %vm283 = vcmp.gt.f32.partialorder %v267, 0.0
      %vm284 = vcmp.gt.f32.partialorder %v268, 0.0
      %vm285 = vcmp.gt.f32.partialorder %v269, 0.0
      %vm286 = vcmp.gt.f32.partialorder %v270, 0.0
      %vm287 = vcmp.gt.f32.partialorder %v271, 0.0
      %vm288 = vcmp.gt.f32.partialorder %v272, 0.0
      %vm289 = vcmp.gt.f32.partialorder %v273, 0.0
      %vm290 = vcmp.gt.f32.partialorder %v274, 0.0
      %v291 = vmul.f32 %v259, 0.01
      %v292 = vmul.f32 %v260, 0.01
      %v293 = vmul.f32 %v261, 0.01
      %v294 = vmul.f32 %v262, 0.01
      %v295 = vmul.f32 %v263, 0.01
      %v296 = vmul.f32 %v264, 0.01
      %v297 = vmul.f32 %v265, 0.01
      %v298 = vmul.f32 %v266, 0.01
      %v299 = vmul.f32 %v267, 0.01
      %v300 = vmul.f32 %v268, 0.01
      %v301 = vmul.f32 %v269, 0.01
      %v302 = vmul.f32 %v270, 0.01
      %v303 = vmul.f32 %v271, 0.01
      %v304 = vmul.f32 %v272, 0.01
      %v305 = vmul.f32 %v273, 0.01
      %v306 = vmul.f32 %v274, 0.01
      %v307 = vsel %vm275, %v259, %v291
      %v308 = vsel %vm276, %v260, %v292
      %v309 = vsel %vm277, %v261, %v293
      %v310 = vsel %vm278, %v262, %v294
      %v311 = vsel %vm279, %v263, %v295
      %v312 = vsel %vm280, %v264, %v296
      %v313 = vsel %vm281, %v265, %v297
      %v314 = vsel %vm282, %v266, %v298
      %v315 = vsel %vm283, %v267, %v299
      %v316 = vsel %vm284, %v268, %v300
      %v317 = vsel %vm285, %v269, %v301
      %v318 = vsel %vm286, %v270, %v302
      %v319 = vsel %vm287, %v271, %v303
      %v320 = vsel %vm288, %v272, %v304
      %v321 = vsel %vm289, %v273, %v305
      %v322 = vsel %vm290, %v274, %v306
      %v323 = vmax.f32 %v307, %v308
      %v324 = vmax.f32 %v309, %v310
      %v325 = vmax.f32 %v311, %v312
      %v326 = vmax.f32 %v313, %v314
      %v327 = vmax.f32 %v315, %v316
      %v328 = vmax.f32 %v317, %v318
      %v329 = vmax.f32 %v319, %v320
      %v330 = vmax.f32 %v321, %v322
      %v331 = vmax.f32 %v323, %v324
      %v332 = vmax.f32 %v325, %v326
      %v333 = vmax.f32 %v327, %v328
      %v334 = vmax.f32 %v329, %v330
      %335 = vst [vmem:[%s211] sm:$0xff] %v331
      %336 = vst [vmem:[%s211 + $0x8] sm:$0xff] %v332
      %337 = vst [vmem:[%s211 + $0x10] sm:$0xff] %v333
      %338 = vst [vmem:[%s211 + $0x18] sm:$0xff] %v334
      %s339 = smul.u32 4, %s19
      %p340 = scmp.lt.s32.totalorder %s18, 1
      %s341 = scalar_select %p340, %s18, 1
      %p342 = scmp.lt.s32.totalorder %s339, 7
      %s343 = scalar_select %p342, %s339, 7
      %s344 = smul.addr %s341, 8
      %s345 = sadd.s32 %s343, %s344
      %s346 = smul.addr %s345, 8
      %s347 = scalar_lea.vmem %s3, %s346
      // Predicated region
      $region33: #{conv2d_encode_block.3} parent=31 // pred_check
        %p348 = pneg %p116
      $region34: #{conv2d_encode_block.3} parent=31 // pred_check_branch
        %350 = sbr.rel (%p348) target = $region36
      $region35: #{conv2d_encode_block.3} parent=31 // pred_region
        %s351 = smul.u32 4, %s19
      $region36: #{conv2d_encode_block.3} parent=31 // pred_fallthru
        _
    $region32: #{conv2d_encode_block.3} parent=5 // pred_fallthru
      _
    %p352 = scmp.le.s32.totalorder 2, %s9
    // Predicated region
    $region37: #{conv2d_encode_block.3} parent=5 // pred_check
      %p353 = pneg %p352
    $region38: #{conv2d_encode_block.3} parent=5 // pred_check_branch
      %355 = sbr.rel (%p353) target = $region40
    $region39: #{conv2d_encode_block.3} parent=5 // pred_region
      %s356 = ssub.s32 %s9, 2
      // Predicated region
      $region41: #{conv2d_encode_block.3} parent=39 // pred_check
        %p357 = pneg %p122
      $region42: #{conv2d_encode_block.3} parent=39 // pred_check_branch
        %359 = sbr.rel (%p357) target = $region44
      $region43: #{conv2d_encode_block.3} parent=39 // pred_region
        %s360 = smul.u32 4, %s21
        %p361 = scmp.lt.s32.totalorder %s20, 1
        %s362 = scalar_select %p361, %s20, 1
        %p363 = scmp.lt.s32.totalorder %s360, 7
        %s364 = scalar_select %p363, %s360, 7
        %s365 = smul.addr %s362, 8
        %s366 = sadd.s32 %s364, %s365
        %s367 = smul.addr %s366, 8
        %s368 = scalar_lea.vmem %s3, %s367
      $region44: #{conv2d_encode_block.3} parent=39 // pred_fallthru
        _
    $region40: #{conv2d_encode_block.3} parent=5 // pred_fallthru
      _
  $region6: #{conv2d_encode_block.3} parent=0 // loop_footer
    %s13 = sadd.s32 1, %s9
  $region7: #{conv2d_encode_block.3} parent=0 // loop_footer_branch
    %8 = sbr.rel target = $region3
  $region8: #{conv2d_encode_block.3} parent=0 // loop_exit
    _

// kernel: conv2d_encode_block.2
$region0: #{conv2d_encode_block.2}
  #allocation0 [shape = 'u32[]', space=smem, size = 0x4, offset = 0x4, fixed_abs, tag = 'smem constant byte address 0x4 - core index']
  #allocation1 [shape = 'u32[144,128]{1,0:T(1,128)}', space=vmem, size = 0x12000, scoped, tag = 'internal scratch']
  %s0 = inlined_call_operand.vmem [shape: bf16[2,2,10,2,8,12], index: 0, kind: input, shape index: {}]
  %s1 = inlined_call_operand.vmem [shape: bf16[3,12,128], index: 1, kind: input, shape index: {}]
  %s2 = inlined_call_operand.vmem [shape: f32[1,128], index: 2, kind: input, shape index: {}]
  %s3 = inlined_call_operand.vmem [shape: f32[2,16,2,8,128], index: 3, kind: output, shape index: {0}]
  %s4 = inlined_call_operand.vmem [shape: f32[2,2,8,128], index: 4, kind: output, shape index: {1}]
  %5 = xla_tuple %s3, %s4
  %s6 = sld [smem:[#allocation0]]
  $region53: #{conv2d_encode_block.2} parent=0
    _
  %s8 = ssub.s32 1, %s6
  %s9 = scalar_select 0, %s8, %s6
  loop: start=0, step=1, limit=6
  $region2: #{conv2d_encode_block.2} parent=0 // loop_pre_header
    _
  $region3: #{conv2d_encode_block.2} parent=0 // loop_header
    %s11 = sphi 0, %s15
    %p12 = scmp.ge.s32.totalorder %s11, 6
    %s18 = sphi 0, %s30
    %s19 = sphi 0, %s26
    %s20 = sphi 0, %s18
    %s21 = sphi 0, %s19
    %s22 = sphi 0, %s20
    %s23 = sphi 0, %s21
    %s35 = sphi 0, %s37
    %s38 = sphi 0, %s35
    %s39 = sphi 0, %s38
    %s55 = sphi 0, %s39
    %s59 = sphi 0, %s59
    %s61 = sphi 0, %s59
    %s62 = sphi 0, %s61
    %s76 = sphi 0, %s62
    %s80 = sphi 0, %s80
    %s82 = sphi 0, %s80
    %s83 = sphi 0, %s82
    %s97 = sphi 0, %s83
    %s105 = sphi 0, %s107
    %s108 = sphi 0, %s105
    %s109 = sphi 0, %s108
    %s125 = sphi 0, %s109
    %s133 = sphi 0, %s135
    %s136 = sphi 0, %s133
    %s137 = sphi 0, %s136
    %s153 = sphi 0, %s137
  $region4: #{conv2d_encode_block.2} parent=0 // loop_header_branch
    %14 = sbr.rel (%p12) target = $region8
  $region5: #{conv2d_encode_block.2} parent=0 // loop_body
    %s16 = ssub.s32 %s11, 1
    %s17 = ssub.s32 %s11, 2
    %s24 = sadd.s32 1, %s19
    %p25 = scmp.ge.s32.totalorder %s24, 2
    %s26 = scalar_select %p25, 0, %s24
    %s27 = sadd.s32 1, %s18
    %s28 = scalar_select %p25, %s27, %s18
    %p29 = scmp.ge.s32.totalorder %s28, 2
    %s30 = scalar_select %p29, 0, %s28
    %s31 = ssub.s32 %s18, %s30
    %s32 = ssub.s32 %s19, %s26
    %s33 = sor.u32 %s31, %s32
    %p34 = scmp.eq.s32.totalorder %s33, 0
    %s36 = sadd.s32 %s35, 1
    %s37 = scalar_select %p34, %s35, %s36
    %p40 = pneg %p34
    %p41 = scmp.eq.s32.totalorder %s11, 3
    %p42 = por %p40, %p41
    %p43 = scmp.ne.s32.totalorder %s35, %s38
    %p44 = scmp.eq.s32.totalorder %s11, 0
    %p45 = por %p43, %p44
    %p46 = scmp.ne.s32.totalorder %s35, %s38
    %p47 = scmp.eq.s32.totalorder %s16, 3
    %p48 = por %p46, %p47
    %p49 = scmp.ne.s32.totalorder %s38, %s39
    %p50 = scmp.eq.s32.totalorder %s16, 0
    %p51 = por %p49, %p50
    %p52 = scmp.ne.s32.totalorder %s38, %s39
    %p53 = scmp.eq.s32.totalorder %s17, 3
    %p54 = por %p52, %p53
    %p56 = scmp.ne.s32.totalorder %s39, %s55
    %p57 = scmp.eq.s32.totalorder %s17, 0
    %p58 = por %p56, %p57
    %s60 = sadd.s32 %s59, 1
    %p63 = scmp.eq.s32.totalorder %s11, 3
    %p64 = scmp.ne.s32.totalorder %s59, %s61
    %p65 = scmp.eq.s32.totalorder %s11, 0
    %p66 = por %p64, %p65
    %p67 = scmp.ne.s32.totalorder %s59, %s61
    %p68 = scmp.eq.s32.totalorder %s16, 3
    %p69 = por %p67, %p68
    %p70 = scmp.ne.s32.totalorder %s61, %s62
    %p71 = scmp.eq.s32.totalorder %s16, 0
    %p72 = por %p70, %p71
    %p73 = scmp.ne.s32.totalorder %s61, %s62
    %p74 = scmp.eq.s32.totalorder %s17, 3
    %p75 = por %p73, %p74
    %p77 = scmp.ne.s32.totalorder %s62, %s76
    %p78 = scmp.eq.s32.totalorder %s17, 0
    %p79 = por %p77, %p78
    %s81 = sadd.s32 %s80, 1
    %p84 = scmp.eq.s32.totalorder %s11, 3
    %p85 = scmp.ne.s32.totalorder %s80, %s82
    %p86 = scmp.eq.s32.totalorder %s11, 0
    %p87 = por %p85, %p86
    %p88 = scmp.ne.s32.totalorder %s80, %s82
    %p89 = scmp.eq.s32.totalorder %s16, 3
    %p90 = por %p88, %p89
    %p91 = scmp.ne.s32.totalorder %s82, %s83
    %p92 = scmp.eq.s32.totalorder %s16, 0
    %p93 = por %p91, %p92
    %p94 = scmp.ne.s32.totalorder %s82, %s83
    %p95 = scmp.eq.s32.totalorder %s17, 3
    %p96 = por %p94, %p95
    %p98 = scmp.ne.s32.totalorder %s83, %s97
    %p99 = scmp.eq.s32.totalorder %s17, 0
    %p100 = por %p98, %p99
    %s101 = ssub.s32 %s18, %s30
    %s102 = ssub.s32 %s19, %s26
    %s103 = sor.u32 %s101, %s102
    %p104 = scmp.eq.s32.totalorder %s103, 0
    %s106 = sadd.s32 %s105, 1
    %s107 = scalar_select %p104, %s105, %s106
    %p110 = pneg %p104
    %p111 = scmp.eq.s32.totalorder %s11, 3
    %p112 = por %p110, %p111
    %p113 = scmp.ne.s32.totalorder %s105, %s108
    %p114 = scmp.eq.s32.totalorder %s11, 0
    %p115 = por %p113, %p114
    %p116 = scmp.ne.s32.totalorder %s105, %s108
    %p117 = scmp.eq.s32.totalorder %s16, 3
    %p118 = por %p116, %p117
    %p119 = scmp.ne.s32.totalorder %s108, %s109
    %p120 = scmp.eq.s32.totalorder %s16, 0
    %p121 = por %p119, %p120
    %p122 = scmp.ne.s32.totalorder %s108, %s109
    %p123 = scmp.eq.s32.totalorder %s17, 3
    %p124 = por %p122, %p123
    %p126 = scmp.ne.s32.totalorder %s109, %s125
    %p127 = scmp.eq.s32.totalorder %s17, 0
    %p128 = por %p126, %p127
    %s129 = ssub.s32 %s18, %s30
    %s130 = ssub.s32 %s19, %s26
    %s131 = sor.u32 %s129, %s130
    %p132 = scmp.eq.s32.totalorder %s131, 0
    %s134 = sadd.s32 %s133, 1
    %s135 = scalar_select %p132, %s133, %s134
    %p138 = pneg %p132
    %p139 = scmp.eq.s32.totalorder %s11, 3
    %p140 = por %p138, %p139
    %p141 = scmp.ne.s32.totalorder %s133, %s136
    %p142 = scmp.eq.s32.totalorder %s11, 0
    %p143 = por %p141, %p142
    %p144 = scmp.ne.s32.totalorder %s133, %s136
    %p145 = scmp.eq.s32.totalorder %s16, 3
    %p146 = por %p144, %p145
    %p147 = scmp.ne.s32.totalorder %s136, %s137
    %p148 = scmp.eq.s32.totalorder %s16, 0
    %p149 = por %p147, %p148
    %p150 = scmp.ne.s32.totalorder %s136, %s137
    %p151 = scmp.eq.s32.totalorder %s17, 3
    %p152 = por %p150, %p151
    %p154 = scmp.ne.s32.totalorder %s137, %s153
    %p155 = scmp.eq.s32.totalorder %s17, 0
    %p156 = por %p154, %p155
    %p157 = scmp.le.s32.totalorder 1, %s11
    %p158 = scmp.lt.s32.totalorder %s11, 5
    %p159 = pnand %p157, %p158
    %p160 = pneg %p159
    // Predicated region
    $region9: #{conv2d_encode_block.2} parent=5 // pred_check
      _
    $region10: #{conv2d_encode_block.2} parent=5 // pred_check_branch
      %162 = sbr.rel (%p159) target = $region12
    $region11: #{conv2d_encode_block.2} parent=5 // pred_region
      %s163 = ssub.s32 %s11, 1
      // Predicated region
      $region13: #{conv2d_encode_block.2} parent=11 // pred_check
        %p164 = pneg %p72
      $region14: #{conv2d_encode_block.2} parent=11 // pred_check_branch
        %166 = sbr.rel (%p164) target = $region16
      $region15: #{conv2d_encode_block.2} parent=11 // pred_region
        _
      $region16: #{conv2d_encode_block.2} parent=11 // pred_fallthru
        _
      // Predicated region
      $region17: #{conv2d_encode_block.2} parent=11 // pred_check
        %p167 = pneg %p93
      $region18: #{conv2d_encode_block.2} parent=11 // pred_check_branch
        %169 = sbr.rel (%p167) target = $region20
      $region19: #{conv2d_encode_block.2} parent=11 // pred_region
        _
      $region20: #{conv2d_encode_block.2} parent=11 // pred_fallthru
        _
    $region12: #{conv2d_encode_block.2} parent=5 // pred_fallthru
      _
    %p170 = scmp.lt.s32.totalorder %s11, 4
    // Predicated region
    $region21: #{conv2d_encode_block.2} parent=5 // pred_check
      %p171 = pneg %p170
    $region22: #{conv2d_encode_block.2} parent=5 // pred_check_branch
      %173 = sbr.rel (%p171) target = $region24
    $region23: #{conv2d_encode_block.2} parent=5 // pred_region
      // Predicated region
      $region25: #{conv2d_encode_block.2} parent=23 // pred_check
        %p174 = pneg %p45
      $region26: #{conv2d_encode_block.2} parent=23 // pred_check_branch
        %176 = sbr.rel (%p174) target = $region28
      $region27: #{conv2d_encode_block.2} parent=23 // pred_region
        %p177 = scmp.lt.s32.totalorder %s18, 1
        %s178 = scalar_select %p177, %s18, 1
        %p179 = scmp.lt.s32.totalorder %s19, 1
        %s180 = scalar_select %p179, %s19, 1
        %s181 = smul.addr %s180, 20
        %s182 = smul.addr %s178, 40
        %s183 = sadd.s32 %s181, %s182
        %s184 = smul.addr %s183, 4
        %s185 = scalar_lea.vmem %s0, %s184
      $region28: #{conv2d_encode_block.2} parent=23 // pred_fallthru
        _
    $region24: #{conv2d_encode_block.2} parent=5 // pred_fallthru
      _
    %p186 = scmp.le.s32.totalorder 1, %s11
    %p187 = scmp.lt.s32.totalorder %s11, 5
    %p188 = pnand %p186, %p187
    %p189 = pneg %p188
    // Predicated region
    $region29: #{conv2d_encode_block.2} parent=5 // pred_check
      _
    $region30: #{conv2d_encode_block.2} parent=5 // pred_check_branch
      %191 = sbr.rel (%p188) target = $region32
    $region31: #{conv2d_encode_block.2} parent=5 // pred_region
      %s192 = ssub.s32 %s11, 1
      %p193 = scmp.lt.s32.totalorder %s20, 1
      %s194 = scalar_select %p193, %s20, 1
      %p195 = scmp.lt.s32.totalorder %s21, 1
      %s196 = scalar_select %p195, %s21, 1
      %s197 = smul.addr %s196, 20
      %s198 = smul.addr %s194, 40
      %s199 = sadd.s32 %s197, %s198
      %s200 = smul.addr %s199, 4
      %s201 = scalar_lea.vmem %s0, %s200
      %p202 = pneg %p51
      %p203 = pneg %p48
      %p204 = pneg %p72
      %p205 = pneg %p69
      %p206 = pneg %p93
      %p207 = pneg %p90
      %p208 = pneg %p121
      %p209 = pneg %p118
      %s210 = smul.u32 8, %s21
      %p211 = scmp.lt.s32.totalorder %s20, 1
      %s212 = scalar_select %p211, %s20, 1
      %p213 = scmp.lt.s32.totalorder %s210, 15
      %s214 = scalar_select %p213, %s210, 15
      %s215 = smul.addr %s214, 2
      %s216 = smul.addr %s212, 32
      %s217 = sadd.s32 %s215, %s216
      %s218 = smul.addr %s217, 8
      %s219 = scalar_lea.vmem %s3, %s218
      %p220 = pneg %p149
      %p221 = pneg %p146
      %p222 = scmp.lt.s32.totalorder %s20, 1
      %s223 = scalar_select %p222, %s20, 1
      %p224 = scmp.lt.s32.totalorder %s21, 1
      %s225 = scalar_select %p224, %s21, 1
      %s226 = smul.addr %s223, 2
      %s227 = sadd.s32 %s225, %s226
      %s228 = smul.addr %s227, 8
      %s229 = scalar_lea.vmem %s4, %s228
      %p230 = scmp.lt.s32.totalorder %s20, 1
      %s231 = scalar_select %p230, %s20, 1
      %p232 = scmp.lt.s32.totalorder %s21, 1
      %s233 = scalar_select %p232, %s21, 1
      %s234 = smul.addr %s233, 20
      %s235 = smul.addr %s231, 40
      %s236 = sadd.s32 %s234, %s235
      %s237 = smul.addr %s236, 4
      %s238 = scalar_lea.vmem %s0, %s237
      %s239 = smul.u32 8, %s21
      %p240 = scmp.lt.s32.totalorder %s20, 1
      %s241 = scalar_select %p240, %s20, 1
      %p242 = scmp.lt.s32.totalorder %s239, 15
      %s243 = scalar_select %p242, %s239, 15
      %s244 = smul.addr %s243, 2
      %s245 = smul.addr %s241, 32
      %s246 = sadd.s32 %s244, %s245
      %s247 = smul.addr %s246, 8
      %s248 = scalar_lea.vmem %s3, %s247
      %s249 = smul.u32 8, %s21
      %p250 = scmp.lt.s32.totalorder %s20, 1
      %s251 = scalar_select %p250, %s20, 1
      %p252 = scmp.lt.s32.totalorder %s21, 1
      %s253 = scalar_select %p252, %s21, 1
      %s254 = smul.addr %s251, 2
      %s255 = sadd.s32 %s253, %s254
      %s256 = smul.addr %s255, 8
      %s257 = scalar_lea.vmem %s4, %s256
      %v259 = vld [vmem:[%s238] sm:$0xf]
      %v260 = vld [vmem:[%s238 + $0x4] sm:$0xf]
      %v261 = vld [vmem:[%s238 + $0x8] sm:$0xf]
      %v262 = vld [vmem:[%s238 + $0xc] sm:$0xf]
      %v263 = vld [vmem:[%s238 + $0x10] sm:$0xf]
      %v264 = vld [vmem:[%s238 + $0x14] sm:$0xf]
      %v265 = vld [vmem:[%s238 + $0x18] sm:$0xf]
      %v266 = vld [vmem:[%s238 + $0x1c] sm:$0xf]
      %v267 = vld [vmem:[%s238 + $0x20] sm:$0xf]
      %v268 = vld [vmem:[%s238 + $0x24] sm:$0xf]
      %v269 = vld [vmem:[%s238 + $0x28] sm:$0xf]
      %v270 = vld [vmem:[%s238 + $0x2c] sm:$0xf]
      %v271 = vld [vmem:[%s238 + $0x30] sm:$0xf]
      %v272 = vld [vmem:[%s238 + $0x34] sm:$0xf]
      %v273 = vld [vmem:[%s238 + $0x38] sm:$0xf]
      %v274 = vld [vmem:[%s238 + $0x3c] sm:$0xf]
      %v275 = vld [vmem:[%s238 + $0x40] sm:$0xf]
      %v276 = vld [vmem:[%s238 + $0x44] sm:$0xf]
      %v277 = vld [vmem:[%s238 + $0x48] sm:$0xf]
      %v278 = vld [vmem:[%s238 + $0x4c] sm:$0xf]
      %v279 = vld [vmem:[%s1] sm:$0xf]
      %v280 = vld [vmem:[%s1 + $0x4] sm:$0x3]
      %s281 = scalar_lea.vmem %s1, 8
      %v282 = vld [vmem:[%s281] sm:$0xf]
      %v283 = vld [vmem:[%s281 + $0x4] sm:$0x3]
      %v300 = vunpack.c.l.b16 %v261
      %v301 = vunpack.c.l.b16 %v262
      %v302 = vunpack.c.l.b16 %v263
      %v303 = vunpack.c.l.b16 %v264
      %v304 = vunpack.c.l.b16 %v265
      %v305 = vunpack.c.l.b16 %v266
      %v306 = vunpack.c.l.b16 %v267
      %v307 = vunpack.c.l.b16 %v268
      %v308 = vunpack.c.l.b16 %v269
      %v309 = vunpack.c.l.b16 %v270
      %v310 = vunpack.c.l.b16 %v271
      %v311 = vunpack.c.l.b16 %v272
      %v312 = vunpack.c.l.b16 %v273
      %v313 = vunpack.c.l.b16 %v274
      %v314 = vunpack.c.l.b16 %v275
      %v315 = vunpack.c.l.b16 %v276
      %v316 = vpack.c.b16 %v301, %v300
      %v317 = vpack.c.b16 %v303, %v302
      %v318 = vpack.c.b16 %v305, %v304
      %v319 = vpack.c.b16 %v307, %v306
      %v320 = vpack.c.b16 %v309, %v308
      %v321 = vpack.c.b16 %v311, %v310
      %v322 = vpack.c.b16 %v313, %v312
      %v323 = vpack.c.b16 %v315, %v314
      %v326 = vunpack.c.l.b16 %v282
      %v327 = vunpack.c.l.b16 %v283
      %v328 = vpack.c.b16 %v327, %v326
      %vm329 = vcmask 97280
      %v331 = vsel %vm329, %v316, 0
      %v334 = vsel %vm329, %v317, 0
      %v337 = vsel %vm329, %v318, 0
      %v340 = vsel %vm329, %v319, 0
      %v343 = vsel %vm329, %v320, 0
      %v346 = vsel %vm329, %v321, 0
      %v349 = vsel %vm329, %v322, 0
      %v352 = vsel %vm329, %v323, 0
      %vm354 = vcmask 1045504
      %v356 = vsel %vm354, %v328, 0
      %358 = vmatprep.subr.bf16.mxu0 0
      %359 = vmatpush1.bf16.msra.mxu0 %v356
      %360 = vmatprep.subr.bf16.mxu0 0
      %361 = vmatpush1.bf16.msra.mxu0 0
      %362 = vmatprep.subr.bf16.mxu0 0
      %363 = vmatpush1.bf16.msra.mxu0 0
      %364 = vmatprep.subr.bf16.mxu0 0
      %365 = vmatpush1.bf16.msra.mxu0 0
      %366 = vmatprep.subr.bf16.mxu0 0
      %367 = vmatpush1.bf16.msra.mxu0 0
      %368 = vmatprep.subr.bf16.mxu0 0
      %369 = vmatpush1.bf16.msra.mxu0 0
      %370 = vmatprep.subr.bf16.mxu0 0
      %371 = vmatpush1.bf16.msra.mxu0 0
      %372 = vmatprep.subr.bf16.mxu0 0
      %373 = vmatpush1.bf16.msra.mxu0 0
      %374 = vmatprep.subr.bf16.mxu0 0
      %375 = vmatpush1.bf16.msra.mxu0 0
      %376 = vmatprep.subr.bf16.mxu0 0
      %377 = vmatpush1.bf16.msra.mxu0 0
      %378 = vmatprep.subr.bf16.mxu0 0
      %379 = vmatpush1.bf16.msra.mxu0 0
      %380 = vmatprep.subr.bf16.mxu0 0
      %381 = vmatpush1.bf16.msra.mxu0 0
      %382 = vmatprep.subr.bf16.mxu0 0
      %383 = vmatpush1.bf16.msra.mxu0 0
      %384 = vmatprep.subr.bf16.mxu0 0
      %385 = vmatpush1.bf16.msra.mxu0 0
      %386 = vmatprep.subr.bf16.mxu0 0
      %387 = vmatpush1.bf16.msra.mxu0 0
      %388 = vmatprep.subr.bf16.mxu0 0
      %389 = vmatpush1.bf16.msra.mxu0 0
      %390 = vmatprep.mubr.bf16.mxu0 0
      %391 = vmatmul.mubr.bf16.gmra.mrb[0].mxu0 %v331
      %v392 = vpop.f32.mrb[0].mxu0
      %v393 = vadd.f32 0.0, %v392
      %v394 = vpop.f32.mrb[0].mxu0
      %v395 = vpop.f32.mrb[0].mxu0
      %v396 = vadd.f32 0.0, %v395
      %v397 = vpop.f32.mrb[0].mxu0
      %398 = vmatprep.mubr.bf16.mxu0 0
      %399 = vmatmul.mubr.bf16.gmra.mrb[0].mxu0 %v334
      %v400 = vpop.f32.mrb[0].mxu0
      %v401 = vadd.f32 0.0, %v400
      %v402 = vpop.f32.mrb[0].mxu0
      %v403 = vpop.f32.mrb[0].mxu0
      %v404 = vadd.f32 0.0, %v403
      %v405 = vpop.f32.mrb[0].mxu0
      %406 = vmatprep.mubr.bf16.mxu0 0
      %407 = vmatmul.mubr.bf16.gmra.mrb[0].mxu0 %v337
      %v408 = vpop.f32.mrb[0].mxu0
      %v409 = vadd.f32 0.0, %v408
      %v410 = vpop.f32.mrb[0].mxu0
      %v411 = vpop.f32.mrb[0].mxu0
      %v412 = vadd.f32 0.0, %v411
      %v413 = vpop.f32.mrb[0].mxu0
      %414 = vmatprep.mubr.bf16.mxu0 0
      %415 = vmatmul.mubr.bf16.gmra.mrb[0].mxu0 %v340
      %v416 = vpop.f32.mrb[0].mxu0
      %v417 = vadd.f32 0.0, %v416
      %v418 = vpop.f32.mrb[0].mxu0
      %v419 = vpop.f32.mrb[0].mxu0
      %v420 = vadd.f32 0.0, %v419
      %v421 = vpop.f32.mrb[0].mxu0
      %422 = vmatprep.mubr.bf16.mxu0 0
      %423 = vmatmul.mubr.bf16.gmra.mrb[0].mxu0 %v343
      %v424 = vpop.f32.mrb[0].mxu0
      %v425 = vadd.f32 0.0, %v424
      %v426 = vpop.f32.mrb[0].mxu0
      %v427 = vpop.f32.mrb[0].mxu0
      %v428 = vadd.f32 0.0, %v427
      %v429 = vpop.f32.mrb[0].mxu0
      %430 = vmatprep.mubr.bf16.mxu0 0
      %431 = vmatmul.mubr.bf16.gmra.mrb[0].mxu0 %v346
      %v432 = vpop.f32.mrb[0].mxu0
      %v433 = vadd.f32 0.0, %v432
      %v434 = vpop.f32.mrb[0].mxu0
      %v435 = vpop.f32.mrb[0].mxu0
      %v436 = vadd.f32 0.0, %v435
      %v437 = vpop.f32.mrb[0].mxu0
      %438 = vmatprep.mubr.bf16.mxu0 0
      %439 = vmatmul.mubr.bf16.gmra.mrb[0].mxu0 %v349
      %v440 = vpop.f32.mrb[0].mxu0
      %v441 = vadd.f32 0.0, %v440
      %v442 = vpop.f32.mrb[0].mxu0
      %v443 = vpop.f32.mrb[0].mxu0
      %v444 = vadd.f32 0.0, %v443
      %v445 = vpop.f32.mrb[0].mxu0
      %446 = vmatprep.mubr.bf16.mxu0 0
      %447 = vmatmul.mubr.bf16.gmra.mrb[0].mxu0 %v352
      %v448 = vpop.f32.mrb[0].mxu0
      %v449 = vadd.f32 0.0, %v448
      %v450 = vpop.f32.mrb[0].mxu0
      %v451 = vpop.f32.mrb[0].mxu0
      %v452 = vadd.f32 0.0, %v451
      %v453 = vpop.f32.mrb[0].mxu0
      %454 = vdwg.mxu0
      %v457 = vunpack.c.l.b16 %v259
      %v458 = vunpack.c.l.b16 %v260
      %v459 = vpack.c.b16 %v458, %v457
      %v462 = vunpack.c.l.b16 %v279
      %v463 = vunpack.c.l.b16 %v280
      %v464 = vpack.c.b16 %v463, %v462
      %v466 = vsel %vm329, %v459, 0
      %v469 = vsel %vm354, %v464, 0
      %471 = vmatprep.subr.bf16.mxu0 0
      %472 = vmatpush1.bf16.msra.mxu0 %v469
      %473 = vmatprep.subr.bf16.mxu0 0
      %474 = vmatpush1.bf16.msra.mxu0 0
      %475 = vmatprep.subr.bf16.mxu0 0
      %476 = vmatpush1.bf16.msra.mxu0 0
      %477 = vmatprep.subr.bf16.mxu0 0
      %478 = vmatpush1.bf16.msra.mxu0 0
      %479 = vmatprep.subr.bf16.mxu0 0
      %480 = vmatpush1.bf16.msra.mxu0 0
      %481 = vmatprep.subr.bf16.mxu0 0
      %482 = vmatpush1.bf16.msra.mxu0 0
      %483 = vmatprep.subr.bf16.mxu0 0
      %484 = vmatpush1.bf16.msra.mxu0 0
      %485 = vmatprep.subr.bf16.mxu0 0
      %486 = vmatpush1.bf16.msra.mxu0 0
      %487 = vmatprep.subr.bf16.mxu0 0
      %488 = vmatpush1.bf16.msra.mxu0 0
      %489 = vmatprep.subr.bf16.mxu0 0
      %490 = vmatpush1.bf16.msra.mxu0 0
      %491 = vmatprep.subr.bf16.mxu0 0
      %492 = vmatpush1.bf16.msra.mxu0 0
      %493 = vmatprep.subr.bf16.mxu0 0
      %494 = vmatpush1.bf16.msra.mxu0 0
      %495 = vmatprep.subr.bf16.mxu0 0
      %496 = vmatpush1.bf16.msra.mxu0 0
      %497 = vmatprep.subr.bf16.mxu0 0
      %498 = vmatpush1.bf16.msra.mxu0 0
      %499 = vmatprep.subr.bf16.mxu0 0
      %500 = vmatpush1.bf16.msra.mxu0 0
      %501 = vmatprep.subr.bf16.mxu0 0
      %502 = vmatpush1.bf16.msra.mxu0 0
      %503 = vmatprep.mubr.bf16.mxu0 0
      %504 = vmatmul.mubr.bf16.gmra.mrb[0].mxu0 %v466
      %v505 = vpop.f32.mrb[0].mxu0
      %v506 = vadd.f32 %v393, %v505
      %v507 = vpop.f32.mrb[0].mxu0
      %v508 = vpop.f32.mrb[0].mxu0
      %v509 = vadd.f32 %v396, %v508
      %v510 = vpop.f32.mrb[0].mxu0
      %511 = vmatprep.mubr.bf16.mxu0 0
      %512 = vmatmul.mubr.bf16.gmra.mrb[0].mxu0 %v331
      %v513 = vpop.f32.mrb[0].mxu0
      %v514 = vadd.f32 %v401, %v513
      %v515 = vpop.f32.mrb[0].mxu0
      %v516 = vpop.f32.mrb[0].mxu0
      %v517 = vadd.f32 %v404, %v516
      %v518 = vpop.f32.mrb[0].mxu0
      %519 = vmatprep.mubr.bf16.mxu0 0
      %520 = vmatmul.mubr.bf16.gmra.mrb[0].mxu0 %v334
      %v521 = vpop.f32.mrb[0].mxu0
      %v522 = vadd.f32 %v409, %v521
      %v523 = vpop.f32.mrb[0].mxu0
      %v524 = vpop.f32.mrb[0].mxu0
      %v525 = vadd.f32 %v412, %v524
      %v526 = vpop.f32.mrb[0].mxu0
      %527 = vmatprep.mubr.bf16.mxu0 0
      %528 = vmatmul.mubr.bf16.gmra.mrb[0].mxu0 %v337
      %v529 = vpop.f32.mrb[0].mxu0
      %v530 = vadd.f32 %v417, %v529
      %v531 = vpop.f32.mrb[0].mxu0
      %v532 = vpop.f32.mrb[0].mxu0
      %v533 = vadd.f32 %v420, %v532
      %v534 = vpop.f32.mrb[0].mxu0
      %535 = vmatprep.mubr.bf16.mxu0 0
      %536 = vmatmul.mubr.bf16.gmra.mrb[0].mxu0 %v340
      %v537 = vpop.f32.mrb[0].mxu0
      %v538 = vadd.f32 %v425, %v537
      %v539 = vpop.f32.mrb[0].mxu0
      %v540 = vpop.f32.mrb[0].mxu0
      %v541 = vadd.f32 %v428, %v540
      %v542 = vpop.f32.mrb[0].mxu0
      %543 = vmatprep.mubr.bf16.mxu0 0
      %544 = vmatmul.mubr.bf16.gmra.mrb[0].mxu0 %v343
      %v545 = vpop.f32.mrb[0].mxu0
      %v546 = vadd.f32 %v433, %v545
      %v547 = vpop.f32.mrb[0].mxu0
      %v548 = vpop.f32.mrb[0].mxu0
      %v549 = vadd.f32 %v436, %v548
      %v550 = vpop.f32.mrb[0].mxu0
      %551 = vmatprep.mubr.bf16.mxu0 0
      %552 = vmatmul.mubr.bf16.gmra.mrb[0].mxu0 %v346
      %v553 = vpop.f32.mrb[0].mxu0
      %v554 = vadd.f32 %v441, %v553
      %v555 = vpop.f32.mrb[0].mxu0
      %v556 = vpop.f32.mrb[0].mxu0
      %v557 = vadd.f32 %v444, %v556
      %v558 = vpop.f32.mrb[0].mxu0
      %559 = vmatprep.mubr.bf16.mxu0 0
      %560 = vmatmul.mubr.bf16.gmra.mrb[0].mxu0 %v349
      %v561 = vpop.f32.mrb[0].mxu0
      %v562 = vadd.f32 %v449, %v561
      %v563 = vpop.f32.mrb[0].mxu0
      %v564 = vpop.f32.mrb[0].mxu0
      %v565 = vadd.f32 %v452, %v564
      %v566 = vpop.f32.mrb[0].mxu0
      %567 = vdwg.mxu0
      %s568 = scalar_lea.vmem %s1, 16
      %v569 = vld [vmem:[%s568] sm:$0xf]
      %v570 = vld [vmem:[%s568 + $0x4] sm:$0x3]
      %v573 = vunpack.c.l.b16 %v277
      %v574 = vunpack.c.l.b16 %v278
      %v575 = vpack.c.b16 %v574, %v573
      %v578 = vunpack.c.l.b16 %v569
      %v579 = vunpack.c.l.b16 %v570
      %v580 = vpack.c.b16 %v579, %v578
      %v582 = vsel %vm329, %v575, 0
      %v585 = vsel %vm354, %v580, 0
      %587 = vmatprep.subr.bf16.mxu0 0
      %588 = vmatpush1.bf16.msra.mxu0 %v585
      %589 = vmatprep.subr.bf16.mxu0 0
      %590 = vmatpush1.bf16.msra.mxu0 0
      %591 = vmatprep.subr.bf16.mxu0 0
      %592 = vmatpush1.bf16.msra.mxu0 0
      %593 = vmatprep.subr.bf16.mxu0 0
      %594 = vmatpush1.bf16.msra.mxu0 0
      %595 = vmatprep.subr.bf16.mxu0 0
      %596 = vmatpush1.bf16.msra.mxu0 0
      %597 = vmatprep.subr.bf16.mxu0 0
      %598 = vmatpush1.bf16.msra.mxu0 0
      %599 = vmatprep.subr.bf16.mxu0 0
      %600 = vmatpush1.bf16.msra.mxu0 0
      %601 = vmatprep.subr.bf16.mxu0 0
      %602 = vmatpush1.bf16.msra.mxu0 0
      %603 = vmatprep.subr.bf16.mxu0 0
      %604 = vmatpush1.bf16.msra.mxu0 0
      %605 = vmatprep.subr.bf16.mxu0 0
      %606 = vmatpush1.bf16.msra.mxu0 0
      %607 = vmatprep.subr.bf16.mxu0 0
      %608 = vmatpush1.bf16.msra.mxu0 0
      %609 = vmatprep.subr.bf16.mxu0 0
      %610 = vmatpush1.bf16.msra.mxu0 0
      %611 = vmatprep.subr.bf16.mxu0 0
      %612 = vmatpush1.bf16.msra.mxu0 0
      %613 = vmatprep.subr.bf16.mxu0 0
      %614 = vmatpush1.bf16.msra.mxu0 0
      %615 = vmatprep.subr.bf16.mxu0 0
      %616 = vmatpush1.bf16.msra.mxu0 0
      %617 = vmatprep.subr.bf16.mxu0 0
      %618 = vmatpush1.bf16.msra.mxu0 0
      %619 = vmatprep.mubr.bf16.mxu0 0
      %620 = vmatmul.mubr.bf16.gmra.mrb[0].mxu0 %v334
      %v621 = vpop.f32.mrb[0].mxu0
      %v622 = vadd.f32 0.0, %v621
      %v623 = vpop.f32.mrb[0].mxu0
      %v624 = vpop.f32.mrb[0].mxu0
      %v625 = vadd.f32 0.0, %v624
      %v626 = vpop.f32.mrb[0].mxu0
      %627 = vmatprep.mubr.bf16.mxu0 0
      %628 = vmatmul.mubr.bf16.gmra.mrb[0].mxu0 %v337
      %v629 = vpop.f32.mrb[0].mxu0
      %v630 = vadd.f32 0.0, %v629
      %v631 = vpop.f32.mrb[0].mxu0
      %v632 = vpop.f32.mrb[0].mxu0
      %v633 = vadd.f32 0.0, %v632
      %v634 = vpop.f32.mrb[0].mxu0
      %635 = vmatprep.mubr.bf16.mxu0 0
      %636 = vmatmul.mubr.bf16.gmra.mrb[0].mxu0 %v340
      %v637 = vpop.f32.mrb[0].mxu0
      %v638 = vadd.f32 0.0, %v637
      %v639 = vpop.f32.mrb[0].mxu0
      %v640 = vpop.f32.mrb[0].mxu0
      %v641 = vadd.f32 0.0, %v640
      %v642 = vpop.f32.mrb[0].mxu0
      %643 = vmatprep.mubr.bf16.mxu0 0
      %644 = vmatmul.mubr.bf16.gmra.mrb[0].mxu0 %v343
      %v645 = vpop.f32.mrb[0].mxu0
      %v646 = vadd.f32 0.0, %v645
      %v647 = vpop.f32.mrb[0].mxu0
      %v648 = vpop.f32.mrb[0].mxu0
      %v649 = vadd.f32 0.0, %v648
      %v650 = vpop.f32.mrb[0].mxu0
      %651 = vmatprep.mubr.bf16.mxu0 0
      %652 = vmatmul.mubr.bf16.gmra.mrb[0].mxu0 %v346
      %v653 = vpop.f32.mrb[0].mxu0
      %v654 = vadd.f32 0.0, %v653
      %v655 = vpop.f32.mrb[0].mxu0
      %v656 = vpop.f32.mrb[0].mxu0
      %v657 = vadd.f32 0.0, %v656
      %v658 = vpop.f32.mrb[0].mxu0
      %659 = vmatprep.mubr.bf16.mxu0 0
      %660 = vmatmul.mubr.bf16.gmra.mrb[0].mxu0 %v349
      %v661 = vpop.f32.mrb[0].mxu0
      %v662 = vadd.f32 0.0, %v661
      %v663 = vpop.f32.mrb[0].mxu0
      %v664 = vpop.f32.mrb[0].mxu0
      %v665 = vadd.f32 0.0, %v664
      %v666 = vpop.f32.mrb[0].mxu0
      %667 = vmatprep.mubr.bf16.mxu0 0
      %668 = vmatmul.mubr.bf16.gmra.mrb[0].mxu0 %v352
      %v669 = vpop.f32.mrb[0].mxu0
      %v670 = vadd.f32 0.0, %v669
      %v671 = vpop.f32.mrb[0].mxu0
      %v672 = vpop.f32.mrb[0].mxu0
      %v673 = vadd.f32 0.0, %v672
      %v674 = vpop.f32.mrb[0].mxu0
      %675 = vmatprep.mubr.bf16.mxu0 0
      %676 = vmatmul.mubr.bf16.gmra.mrb[0].mxu0 %v582
      %v677 = vpop.f32.mrb[0].mxu0
      %v678 = vadd.f32 0.0, %v677
      %v679 = vpop.f32.mrb[0].mxu0
      %v680 = vpop.f32.mrb[0].mxu0
      %v681 = vadd.f32 0.0, %v680
      %v682 = vpop.f32.mrb[0].mxu0
      %683 = vdwg.mxu0
      %v684 = vadd.f32 %v506, %v622
      %v685 = vadd.f32 %v509, %v625
      %v686 = vadd.f32 %v514, %v630
      %v687 = vadd.f32 %v517, %v633
      %v688 = vadd.f32 %v522, %v638
      %v689 = vadd.f32 %v525, %v641
      %v690 = vadd.f32 %v530, %v646
      %v691 = vadd.f32 %v533, %v649
      %v692 = vadd.f32 %v538, %v654
      %v693 = vadd.f32 %v541, %v657
      %v694 = vadd.f32 %v546, %v662
      %v695 = vadd.f32 %v549, %v665
      %v696 = vadd.f32 %v554, %v670
      %v697 = vadd.f32 %v557, %v673
      %v698 = vadd.f32 %v562, %v678
      %v699 = vadd.f32 %v565, %v681
      %v700 = vld [vmem:[%s2] sm:$0x1]
      %v702 = vlaneseq
      %v703 = vshrl.u32 %v702, 7
      %v704 = vsub.s32 0, %v703
      %v705 = vrot.slane %v700, %v704
      %v707 = vadd.f32 %v684, %v705
      %v708 = vadd.f32 %v685, %v705
      %v709 = vadd.f32 %v686, %v705
      %v710 = vadd.f32 %v687, %v705
      %v711 = vadd.f32 %v688, %v705
      %v712 = vadd.f32 %v689, %v705
      %v713 = vadd.f32 %v690, %v705
      %v714 = vadd.f32 %v691, %v705
      %v715 = vadd.f32 %v692, %v705
      %v716 = vadd.f32 %v693, %v705
      %v717 = vadd.f32 %v694, %v705
      %v718 = vadd.f32 %v695, %v705
      %v719 = vadd.f32 %v696, %v705
      %v720 = vadd.f32 %v697, %v705
      %v721 = vadd.f32 %v698, %v705
      %v722 = vadd.f32 %v699, %v705
      %723 = vst [vmem:[%s248] sm:$0xff] %v707
      %724 = vst [vmem:[%s248 + $0x8] sm:$0xff] %v708
      %725 = vst [vmem:[%s248 + $0x10] sm:$0xff] %v709
      %726 = vst [vmem:[%s248 + $0x18] sm:$0xff] %v710
      %727 = vst [vmem:[%s248 + $0x20] sm:$0xff] %v711
      %728 = vst [vmem:[%s248 + $0x28] sm:$0xff] %v712
      %729 = vst [vmem:[%s248 + $0x30] sm:$0xff] %v713
      %730 = vst [vmem:[%s248 + $0x38] sm:$0xff] %v714
      %731 = vst [vmem:[%s248 + $0x40] sm:$0xff] %v715
      %732 = vst [vmem:[%s248 + $0x48] sm:$0xff] %v716
      %733 = vst [vmem:[%s248 + $0x50] sm:$0xff] %v717
      %734 = vst [vmem:[%s248 + $0x58] sm:$0xff] %v718
      %735 = vst [vmem:[%s248 + $0x60] sm:$0xff] %v719
      %736 = vst [vmem:[%s248 + $0x68] sm:$0xff] %v720
      %737 = vst [vmem:[%s248 + $0x70] sm:$0xff] %v721
      %738 = vst [vmem:[%s248 + $0x78] sm:$0xff] %v722
      %v739 = vadd.f32 %v707, %v708
      %v740 = vadd.f32 %v739, %v709
      %v741 = vadd.f32 %v740, %v710
      %v742 = vadd.f32 %v741, %v711
      %v743 = vadd.f32 %v742, %v712
      %v744 = vadd.f32 %v743, %v713
      %v745 = vadd.f32 %v744, %v714
      %v746 = vadd.f32 %v745, %v715
      %v747 = vadd.f32 %v746, %v716
      %v748 = vadd.f32 %v747, %v717
      %v749 = vadd.f32 %v748, %v718
      %v750 = vadd.f32 %v749, %v719
      %v751 = vadd.f32 %v750, %v720
      %v752 = vadd.f32 %v751, %v721
      %v753 = vadd.f32 %v752, %v722
      %v754 = vrot.slane %v753, 4
      %v755 = vadd.f32 %v753, %v754
      %v756 = vrot.slane %v755, 2
      %v757 = vadd.f32 %v755, %v756
      %v758 = vrot.slane %v757, 1
      %v759 = vadd.f32 %v757, %v758
      %v760 = vmul.f32 %v707, %v707
      %v761 = vmul.f32 %v708, %v708
      %v762 = vmul.f32 %v709, %v709
      %v763 = vmul.f32 %v710, %v710
      %v764 = vmul.f32 %v711, %v711
      %v765 = vmul.f32 %v712, %v712
      %v766 = vmul.f32 %v713, %v713
      %v767 = vmul.f32 %v714, %v714
      %v768 = vmul.f32 %v715, %v715
      %v769 = vmul.f32 %v716, %v716
      %v770 = vmul.f32 %v717, %v717
      %v771 = vmul.f32 %v718, %v718
      %v772 = vmul.f32 %v719, %v719
      %v773 = vmul.f32 %v720, %v720
      %v774 = vmul.f32 %v721, %v721
      %v775 = vmul.f32 %v722, %v722
      %v776 = vadd.f32 %v760, %v761
      %v777 = vadd.f32 %v776, %v762
      %v778 = vadd.f32 %v777, %v763
      %v779 = vadd.f32 %v778, %v764
      %v780 = vadd.f32 %v779, %v765
      %v781 = vadd.f32 %v780, %v766
      %v782 = vadd.f32 %v781, %v767
      %v783 = vadd.f32 %v782, %v768
      %v784 = vadd.f32 %v783, %v769
      %v785 = vadd.f32 %v784, %v770
      %v786 = vadd.f32 %v785, %v771
      %v787 = vadd.f32 %v786, %v772
      %v788 = vadd.f32 %v787, %v773
      %v789 = vadd.f32 %v788, %v774
      %v790 = vadd.f32 %v789, %v775
      %v791 = vrot.slane %v790, 4
      %v792 = vadd.f32 %v790, %v791
      %v793 = vrot.slane %v792, 2
      %v794 = vadd.f32 %v792, %v793
      %v795 = vrot.slane %v794, 1
      %v796 = vadd.f32 %v794, %v795
      %v797 = vlaneseq
      %v798 = vshrl.u32 %v797, 7
      %vm799 = vcmp.eq.s32.totalorder %v798, 0
      %vm800 = vcmp.eq.s32.totalorder %v798, 1
      %v801 = vsel %vm800, %v796, 0.0
      %v802 = vsel %vm799, %v759, %v801
      %803 = vst [vmem:[%s257] sm:$0xff] %v802
      %s804 = smul.u32 8, %s21
      %p805 = scmp.lt.s32.totalorder %s20, 1
      %s806 = scalar_select %p805, %s20, 1
      %p807 = scmp.lt.s32.totalorder %s804, 15
      %s808 = scalar_select %p807, %s804, 15
      %s809 = smul.addr %s808, 2
      %s810 = smul.addr %s806, 32
      %s811 = sadd.s32 %s809, %s810
      %s812 = smul.addr %s811, 8
      %s813 = scalar_lea.vmem %s3, %s812
      %p814 = scmp.lt.s32.totalorder %s20, 1
      %s815 = scalar_select %p814, %s20, 1
      %p816 = scmp.lt.s32.totalorder %s21, 1
      %s817 = scalar_select %p816, %s21, 1
      %s818 = smul.addr %s815, 2
      %s819 = sadd.s32 %s817, %s818
      %s820 = smul.addr %s819, 8
      %s821 = scalar_lea.vmem %s4, %s820
      // Predicated region
      $region33: #{conv2d_encode_block.2} parent=31 // pred_check
        %p822 = pneg %p118
      $region34: #{conv2d_encode_block.2} parent=31 // pred_check_branch
        %824 = sbr.rel (%p822) target = $region36
      $region35: #{conv2d_encode_block.2} parent=31 // pred_region
        %s825 = smul.u32 8, %s21
      $region36: #{conv2d_encode_block.2} parent=31 // pred_fallthru
        _
      // Predicated region
      $region37: #{conv2d_encode_block.2} parent=31 // pred_check
        %p826 = pneg %p146
      $region38: #{conv2d_encode_block.2} parent=31 // pred_check_branch
        %828 = sbr.rel (%p826) target = $region40
      $region39: #{conv2d_encode_block.2} parent=31 // pred_region
        _
      $region40: #{conv2d_encode_block.2} parent=31 // pred_fallthru
        _
    $region32: #{conv2d_encode_block.2} parent=5 // pred_fallthru
      _
    %p829 = scmp.le.s32.totalorder 2, %s11
    // Predicated region
    $region41: #{conv2d_encode_block.2} parent=5 // pred_check
      %p830 = pneg %p829
    $region42: #{conv2d_encode_block.2} parent=5 // pred_check_branch
      %832 = sbr.rel (%p830) target = $region44
    $region43: #{conv2d_encode_block.2} parent=5 // pred_region
      %s833 = ssub.s32 %s11, 2
      // Predicated region
      $region45: #{conv2d_encode_block.2} parent=43 // pred_check
        %p834 = pneg %p124
      $region46: #{conv2d_encode_block.2} parent=43 // pred_check_branch
        %836 = sbr.rel (%p834) target = $region48
      $region47: #{conv2d_encode_block.2} parent=43 // pred_region
        %s837 = smul.u32 8, %s23
        %p838 = scmp.lt.s32.totalorder %s22, 1
        %s839 = scalar_select %p838, %s22, 1
        %p840 = scmp.lt.s32.totalorder %s837, 15
        %s841 = scalar_select %p840, %s837, 15
        %s842 = smul.addr %s841, 2
        %s843 = smul.addr %s839, 32
        %s844 = sadd.s32 %s842, %s843
        %s845 = smul.addr %s844, 8
        %s846 = scalar_lea.vmem %s3, %s845
      $region48: #{conv2d_encode_block.2} parent=43 // pred_fallthru
        _
      // Predicated region
      $region49: #{conv2d_encode_block.2} parent=43 // pred_check
        %p847 = pneg %p152
      $region50: #{conv2d_encode_block.2} parent=43 // pred_check_branch
        %849 = sbr.rel (%p847) target = $region52
      $region51: #{conv2d_encode_block.2} parent=43 // pred_region
        %p850 = scmp.lt.s32.totalorder %s22, 1
        %s851 = scalar_select %p850, %s22, 1
        %p852 = scmp.lt.s32.totalorder %s23, 1
        %s853 = scalar_select %p852, %s23, 1
        %s854 = smul.addr %s851, 2
        %s855 = sadd.s32 %s853, %s854
        %s856 = smul.addr %s855, 8
        %s857 = scalar_lea.vmem %s4, %s856
      $region52: #{conv2d_encode_block.2} parent=43 // pred_fallthru
        _
    $region44: #{conv2d_encode_block.2} parent=5 // pred_fallthru
      _
  $region6: #{conv2d_encode_block.2} parent=0 // loop_footer
    %s15 = sadd.s32 1, %s11
  $region7: #{conv2d_encode_block.2} parent=0 // loop_footer_branch
    %10 = sbr.rel target = $region3
  $region8: #{conv2d_encode_block.2} parent=0 // loop_exit
    _

</llo_original>
